<compile_context>
chip_gen: v6e
topology: v6e:2x2x1
jax: 0.10.0
libtpu: 0.0.40
codegen_flags: <defaults>
</compile_context>

<pallas_src>
import functools

import jax
import jax.numpy as jnp
from jax.experimental import pallas as pl
from jax.experimental.pallas import tpu as pltpu


_LANE = 128          # pad channel dims to the vreg lane width
_SUBLANE_BF16 = 16   # pad the node dim to the bf16 sublane packing


def _round_up(x, m):
    return ((x + m - 1) // m) * m


# ----------------------------------------------------------------------------
# Pallas kernel: one GConvGRU step per grid iteration (grid axis = time)
# ----------------------------------------------------------------------------
def _gconv_gru_kernel(K, Cin, F, Fp,
                      L_ref, x_ref, h0_ref, wg_ref, bg_ref, whh_ref,
                      o_ref, h_scr, xh_scr):
    """Fused GConvGRU rollout step.

    L_ref   : (Np, Np)        bf16  scaled Laplacian (constant index -> resident)
    x_ref   : (1, Np, Cin)    f32   node features for this timestep (streamed)
    h0_ref  : (Np, Fp)        f32   initial hidden state (read at t == 0)
    wg_ref  : (K, Ct, 3*Fp)   bf16  fused, lane-padded gate weights
    bg_ref  : (1, 3*Fp)       f32   folded, lane-padded biases
    whh_ref : (K, Fp, Fp)     bf16  candidate H-part weights
    o_ref   : (1, Np, Fp)     f32   hidden state for this timestep
    h_scr   : (Np, Fp)        f32   carried hidden state (VMEM scratch)
    xh_scr  : (Np, Ct)        f32   [X_t | H] assembly buffer (VMEM scratch)
    """
    t = pl.program_id(0)

    @pl.when(t == 0)
    def _init():
        xh_scr[...] = jnp.zeros_like(xh_scr)   # zero once; padded tail stays 0
        h_scr[...] = h0_ref[...]

    L = L_ref[...]                  # bf16, resident across all timesteps
    H = h_scr[...]                  # f32 carried hidden state

    # Assemble [X_t | H] in VMEM (no host-side concat / extra HBM round trip).
    xh_scr[:, :Cin] = x_ref[0]
    xh_scr[:, Cin:Cin + F] = H[:, :F]

    def chain(T0_f32, w_ref):
        """sum_k T_k(L_hat) @ W_k with one shared Chebyshev recurrence.

        bf16 MXU operands with f32 accumulation; each T_k is cast to bf16
        exactly once and reused as lhs of both L@T_k and T_k@W_k.  The
        recurrence (T_1 = L@T_0, T_k = 2 L@T_{k-1} - T_{k-2}) is kept in f32.
        """
        T0_bf = T0_f32.astype(jnp.bfloat16)
        acc = jnp.dot(T0_bf, w_ref[0], preferred_element_type=jnp.float32)
        if K > 1:
            Tm2 = T0_f32
            Tm1 = jnp.dot(L, T0_bf, preferred_element_type=jnp.float32)
            Tm1_bf = Tm1.astype(jnp.bfloat16)
            acc = acc + jnp.dot(Tm1_bf, w_ref[1],
                                preferred_element_type=jnp.float32)
            for k in range(2, K):
                Tk = 2.0 * jnp.dot(L, Tm1_bf,
                                   preferred_element_type=jnp.float32) - Tm2
                Tk_bf = Tk.astype(jnp.bfloat16)
                acc = acc + jnp.dot(Tk_bf, w_ref[k],
                                    preferred_element_type=jnp.float32)
                Tm2, Tm1, Tm1_bf = Tm1, Tk, Tk_bf
        return acc

    # Chain 1 (shared over [X|H]): one fused, lane-aligned [Z | R | Cx] slab.
    # Bias is added after the full k-sum so the per-k weight matmuls accumulate
    # back-to-back on the MXU.
    ZRC = chain(xh_scr[...], wg_ref) + bg_ref[...]     # (Np, 3*Fp) f32
    Z = jax.nn.sigmoid(ZRC[:, :Fp])
    R = jax.nn.sigmoid(ZRC[:, Fp:2 * Fp])
    Cx = ZRC[:, 2 * Fp:]

    # Chain 2 (the only other one): over H*R, candidate's H-part.
    Ch = chain(H * R, whh_ref)                         # (Np, Fp) f32

    H_new = Z * H + (1.0 - Z) * jnp.tanh(Cx + Ch)
    h_scr[...] = H_new                                 # carry to the next step
    o_ref[0] = H_new                                   # lane-dense per-step output


# ----------------------------------------------------------------------------
# Glue: dense scaled Laplacian (sym normalization), parameter init / packing
# ----------------------------------------------------------------------------
def _scaled_laplacian_dense(edge_index, edge_weight, num_nodes, lambda_max):
    """L = I - D^{-1/2} A D^{-1/2};  L_hat = (2/lambda_max) L - I  (sym norm)."""
    row, col = edge_index[0], edge_index[1]
    A = jnp.zeros((num_nodes, num_nodes), jnp.float32).at[row, col].add(edge_weight)
    deg = jnp.zeros((num_nodes,), jnp.float32).at[row].add(edge_weight)
    dinv = jnp.where(deg > 0, jax.lax.rsqrt(deg), 0.0)
    A_norm = dinv[:, None] * A * dinv[None, :]
    eye = jnp.eye(num_nodes, dtype=jnp.float32)
    L = eye - A_norm
    return (2.0 / lambda_max) * L - eye


def build_scaled_laplacian(edge_index, edge_weight, num_nodes, lambda_max=2.0,
                           pad_to=None):
    """Dense L_hat, zero-padded to (Np, Np) and cast to bf16.

    Built ONCE per graph and reused for the whole rollout (hoisted out of the
    per-step path)."""
    L = _scaled_laplacian_dense(edge_index, edge_weight, num_nodes, lambda_max)
    Np = pad_to if pad_to is not None else _round_up(num_nodes, _SUBLANE_BF16)
    Lp = jnp.zeros((Np, Np), jnp.float32).at[:num_nodes, :num_nodes].set(L)
    return Lp.astype(jnp.bfloat16)


def init_gconv_gru_params(key, in_channels, out_channels, K):
    """Glorot-uniform weights, zero biases (PyG ChebConv shapes)."""
    names_x = ["x_z", "x_r", "x_h"]
    names_h = ["h_z", "h_r", "h_h"]
    params = {}
    keys = jax.random.split(key, 6)
    for i, name in enumerate(names_x + names_h):
        fin = in_channels if name in names_x else out_channels
        limit = (6.0 / (fin + out_channels)) ** 0.5
        params[f"w_{name}"] = jax.random.uniform(
            keys[i], (K, fin, out_channels), jnp.float32, -limit, limit)
        params[f"b_{name}"] = jnp.zeros((1, out_channels), jnp.float32)
    return params


def pack_gconv_gru_params(params, lane=_LANE):
    """Host-side weight re-layout (done once).

    Per k, build the fused gate block of shape (Ct, 3*Fp):
        columns [0:Fp)      : z-gate   rows [0:Cin)=Wxz_k, [Cin:Cin+F)=Whz_k
        columns [Fp:2Fp)    : r-gate   rows [0:Cin)=Wxr_k, [Cin:Cin+F)=Whr_k
        columns [2Fp:3Fp)   : cand.-X  rows [0:Cin)=Wxh_k, H rows zero
    with F padded to Fp (multiple of 128 lanes) and Cin+F padded to Ct, so a
    single matmul against T_k([X|H]) yields a lane-aligned [Z|R|Cx] slab.
    Paired biases are folded; MXU weights are cast to bf16.
    """
    K, Cin, F = params["w_x_z"].shape
    Fp = _round_up(F, lane)
    Ct = _round_up(Cin + F, lane)

    def gate_block(wx, wh):
        w = jnp.zeros((K, Ct, Fp), jnp.float32)
        w = w.at[:, :Cin, :F].set(wx)
        w = w.at[:, Cin:Cin + F, :F].set(wh)
        return w

    w_gates = jnp.concatenate(
        [gate_block(params["w_x_z"], params["w_h_z"]),
         gate_block(params["w_x_r"], params["w_h_r"]),
         gate_block(params["w_x_h"], jnp.zeros((K, F, F), jnp.float32))],
        axis=2)                                               # (K, Ct, 3*Fp)

    b = jnp.zeros((1, 3 * Fp), jnp.float32)
    b = b.at[:, 0 * Fp:0 * Fp + F].set(params["b_x_z"] + params["b_h_z"])
    b = b.at[:, 1 * Fp:1 * Fp + F].set(params["b_x_r"] + params["b_h_r"])
    b = b.at[:, 2 * Fp:2 * Fp + F].set(params["b_x_h"] + params["b_h_h"])

    w_hh = jnp.zeros((K, Fp, Fp), jnp.float32).at[:, :F, :F].set(params["w_h_h"])

    return {"K": K, "Cin": Cin, "F": F, "Fp": Fp, "Ct": Ct,
            "w_gates": w_gates.astype(jnp.bfloat16),
            "b_gates": b,                                    # keep f32
            "w_hh": w_hh.astype(jnp.bfloat16)}


# ----------------------------------------------------------------------------
# VMEM sizing (generation-aware)
# ----------------------------------------------------------------------------
def _vmem_capacity_bytes():
    try:
        return int(pltpu.get_tpu_info().vmem_capacity_bytes)
    except Exception:
        return 64 * 1024 * 1024   # most conservative per-core capacity (v7x)


def _estimate_vmem_bytes(Np, Cin, Ct, Fp, K):
    # Constant-index resident blocks are still double-buffer allocated by the
    # pipeline, so count them twice.
    resident = 2 * (2 * Np * Np                     # L_hat (bf16)
                    + 4 * Np * Fp                   # H0 (f32)
                    + 2 * K * Ct * 3 * Fp           # fused gate weights (bf16)
                    + 2 * K * Fp * Fp               # candidate H weights (bf16)
                    + 4 * 3 * Fp)                   # folded bias (f32)
    streamed = 2 * (4 * Np * Cin + 4 * Np * Fp)     # X_t in + H_t out, double-buffered
    scratch = 4 * Np * (Fp + Ct)                    # H carry + [X|H] assembly
    live = ((4 + 2) * 2 * Np * Ct                   # chain-1 live T_k (f32 + bf16)
            + (4 + 2) * 2 * Np * Fp                 # chain-2 live T_k
            + 4 * Np * 3 * Fp                       # ZRC slab
            + 6 * 4 * Np * Fp)                      # gating temporaries
    return resident + streamed + scratch + live


# ----------------------------------------------------------------------------
# Wrappers
# ----------------------------------------------------------------------------
def gconv_gru_rollout(L_bf, X_seq, packed, H0=None):
    """Run T GConvGRU steps in a single pallas_call.

    L_bf  : (Np, Np) bf16 padded scaled Laplacian (build_scaled_laplacian)
    X_seq : (T, N, Cin) f32 node-feature sequence
    H0    : (N, F) f32 initial hidden state or None (-> zeros, as in PyTorch)
    Returns the hidden state for every step, shape (T, N, F).
    """
    T, N, Cin = X_seq.shape
    K, F = packed["K"], packed["F"]
    Fp, Ct = packed["Fp"], packed["Ct"]
    assert Cin == packed["Cin"]
    Np = L_bf.shape[0]
    assert L_bf.shape == (Np, Np) and Np >= N and Np % 8 == 0

    Xp = jnp.zeros((T, Np, Cin), jnp.float32).at[:, :N, :].set(X_seq)
    H0p = jnp.zeros((Np, Fp), jnp.float32)
    if H0 is not None:
        H0p = H0p.at[:N, :F].set(H0)

    est = _estimate_vmem_bytes(Np, Cin, Ct, Fp, K)
    budget = int(0.85 * _vmem_capacity_bytes())
    if est > budget:
        # TODO(synk): stream L_hat in (row_tile, Np) blocks (emit_pipeline over
        # row tiles per k step, T_k / gate accumulators stay O(N*C) resident)
        # once the resident footprint exceeds VMEM (N ~ 4k on v7x, ~6-7k on
        # v5e/v6e); and shard those row tiles across v7x's two TensorCores.
        raise NotImplementedError(
            f"graph too large for the VMEM-resident path: ~{est} B needed, "
            f"budget {budget} B")
    # Always set the scoped-VMEM limit explicitly (v5e's default is 16 MiB),
    # never above ~85% of the physical per-core capacity (64 MiB on v7x).
    vmem_limit = int(min(max(2 * est, 32 * 1024 * 1024), budget))

    # Advisory cost so XLA schedules the call well against surrounding ops.
    flops = T * (2 * (K - 1) * Np * Np * (Ct + Fp)
                 + 2 * K * Np * (Ct * 3 * Fp + Fp * Fp))
    transcendentals = T * 3 * Np * Fp
    bytes_accessed = (2 * Np * Np
                      + 2 * K * (Ct * 3 * Fp + Fp * Fp) + 4 * 3 * Fp
                      + 4 * Np * Fp
                      + T * 4 * Np * (Cin + Fp))

    grid_spec = pltpu.PrefetchScalarGridSpec(
        num_scalar_prefetch=0,
        grid=(T,),
        in_specs=[
            # Constant index maps -> blocks stay VMEM-resident across steps
            # (no per-step re-DMA of L or the weights).
            pl.BlockSpec((Np, Np), lambda t: (0, 0)),            # L_hat
            pl.BlockSpec((1, Np, Cin), lambda t: (t, 0, 0)),     # X_t (streamed)
            pl.BlockSpec((Np, Fp), lambda t: (0, 0)),            # H0
            pl.BlockSpec((K, Ct, 3 * Fp), lambda t: (0, 0, 0)),  # fused gate W
            pl.BlockSpec((1, 3 * Fp), lambda t: (0, 0)),         # folded bias
            pl.BlockSpec((K, Fp, Fp), lambda t: (0, 0, 0)),      # candidate W_hh
        ],
        out_specs=pl.BlockSpec((1, Np, Fp), lambda t: (t, 0, 0)),
        scratch_shapes=[pltpu.VMEM((Np, Fp), jnp.float32),   # carried hidden state
                        pltpu.VMEM((Np, Ct), jnp.float32)],  # [X_t | H] assembly
    )

    out = pl.pallas_call(
        functools.partial(_gconv_gru_kernel, K, Cin, F, Fp),
        out_shape=jax.ShapeDtypeStruct((T, Np, Fp), jnp.float32),
        grid_spec=grid_spec,
        compiler_params=pltpu.CompilerParams(
            dimension_semantics=("arbitrary",),       # timesteps are sequential
            vmem_limit_bytes=vmem_limit),
        cost_estimate=pl.CostEstimate(flops=int(flops),
                                      transcendentals=int(transcendentals),
                                      bytes_accessed=int(bytes_accessed)),
    )(L_bf, Xp, H0p, packed["w_gates"], packed["b_gates"], packed["w_hh"])

    return out[:, :N, :F]


def gconv_gru_forward(X, edge_index, edge_weight, packed, H=None, lambda_max=2.0):
    """Single-step convenience wrapper (matches the PyTorch module signature)."""
    N = X.shape[0]
    Np = _round_up(N, _SUBLANE_BF16)
    L_bf = build_scaled_laplacian(edge_index, edge_weight, N, lambda_max, pad_to=Np)
    return gconv_gru_rollout(L_bf, X[None], packed, H0=H)[0]


# ----------------------------------------------------------------------------
# Plain-JAX references (original per-gate / per-k module structure)
# ----------------------------------------------------------------------------
def _cheb_ref(L, X, W, b, K, mm_dtype=None):
    def mm(a, bb):
        if mm_dtype is not None:
            a, bb = a.astype(mm_dtype), bb.astype(mm_dtype)
        return jnp.dot(a, bb, preferred_element_type=jnp.float32)
    T0 = X
    out = mm(T0, W[0])
    if K > 1:
        T1 = mm(L, T0)
        out = out + mm(T1, W[1])
        for k in range(2, K):
            T2 = 2.0 * mm(L, T1) - T0
            out = out + mm(T2, W[k])
            T0, T1 = T1, T2
    return out + b


def gconv_gru_reference(X, edge_index, edge_weight, params, H,
                        lambda_max=2.0, mm_dtype=None):
    """Reference with the module's original structure.  mm_dtype=bf16 emulates
    the kernel's bf16-input / f32-accumulate MXU dots."""
    N = X.shape[0]
    K = params["w_x_z"].shape[0]
    L = _scaled_laplacian_dense(edge_index, edge_weight, N, lambda_max)
    cheb = lambda inp, n: _cheb_ref(L, inp, params[f"w_{n}"], params[f"b_{n}"],
                                    K, mm_dtype)
    Z = jax.nn.sigmoid(cheb(X, "x_z") + cheb(H, "h_z"))
    R = jax.nn.sigmoid(cheb(X, "x_r") + cheb(H, "h_r"))
    Ht = jnp.tanh(cheb(X, "x_h") + cheb(H * R, "h_h"))
    return Z * H + (1.0 - Z) * Ht


# ----------------------------------------------------------------------------
if __name__ == "__main__":
    num_nodes = 16
    in_channels = 4
    out_channels = 32
    K = 3
    T = 4   # short rollout

    key = jax.random.PRNGKey(0)
    k_x, k_w, k_p = jax.random.split(key, 3)

    # node-feature sequence (T, N, C_in)
    X_seq = jax.random.normal(k_x, (T, num_nodes, in_channels), jnp.float32)

    # undirected ring graph: edges (i -> i+1) and (i+1 -> i), symmetric weights
    src = jnp.arange(num_nodes, dtype=jnp.int32)
    dst = (src + 1) % num_nodes
    edge_index = jnp.stack(
        [jnp.concatenate([src, dst]), jnp.concatenate([dst, src])], axis=0)
    ew_half = jax.random.uniform(k_w, (num_nodes,), jnp.float32, 0.5, 1.5)
    edge_weight = jnp.concatenate([ew_half, ew_half])

    params = init_gconv_gru_params(k_p, in_channels, out_channels, K)
    packed = pack_gconv_gru_params(params)

    # Build L once (hoisted out of the per-step path) and run the fused rollout.
    Np = _round_up(num_nodes, _SUBLANE_BF16)
    L_bf = build_scaled_laplacian(edge_index, edge_weight, num_nodes, pad_to=Np)
    H_seq = gconv_gru_rollout(L_bf, X_seq, packed, H0=None)
    H_seq = jax.block_until_ready(H_seq)
    assert H_seq.shape == (T, num_nodes, out_channels)

    # Single-step path (H=None -> zeros, then feed the state back).
    H1_single = gconv_gru_forward(X_seq[0], edge_index, edge_weight, packed, H=None)
    H2_single = gconv_gru_forward(X_seq[1], edge_index, edge_weight, packed,
                                  H=H1_single)
    H2_single = jax.block_until_ready(H2_single)

    # References: bf16-emulating (tight) and full-f32 (coarse sanity bound).
    H_bf, H_f32 = [], []
    Hb = jnp.zeros((num_nodes, out_channels), jnp.float32)
    Hf = jnp.zeros((num_nodes, out_channels), jnp.float32)
    for t in range(T):
        Hb = gconv_gru_reference(X_seq[t], edge_index, edge_weight, params, Hb,
                                 mm_dtype=jnp.bfloat16)
        Hf = gconv_gru_reference(X_seq[t], edge_index, edge_weight, params, Hf)
        H_bf.append(Hb)
        H_f32.append(Hf)
    H_bf = jnp.stack(H_bf)
    H_f32 = jnp.stack(H_f32)

    # Tight check against the bf16-MXU-emulating reference (validates the
    # fused/deduplicated/padded restructuring and the rollout carry).
    assert jnp.allclose(H_seq, H_bf, atol=5e-3, rtol=5e-3)
    # Coarse sanity bound against the full-f32 reference (bf16 quantization of L/W).
    assert float(jnp.max(jnp.abs(H_seq - H_f32))) < 0.3
    # Single-step path agrees with the fused rollout.
    assert jnp.allclose(H1_single, H_seq[0], atol=2e-3, rtol=2e-3)
    assert jnp.allclose(H2_single, H_seq[1], atol=2e-3, rtol=2e-3)

    print("KERNEL_OK")
</pallas_src>

<mosaic_0001>
module attributes {stable_mosaic.version = 11 : i64} {
  func.func @_gconv_gru_kernel(%arg0: i32, %arg1: memref<16x16xbf16, #tpu.memory_space<vmem>>, %arg2: memref<1x16x4xf32, #tpu.memory_space<vmem>>, %arg3: memref<16x128xf32, #tpu.memory_space<vmem>>, %arg4: memref<3x128x384xbf16, #tpu.memory_space<vmem>>, %arg5: memref<1x384xf32, #tpu.memory_space<vmem>>, %arg6: memref<3x128x128xbf16, #tpu.memory_space<vmem>>, %arg7: memref<1x16x128xf32, #tpu.memory_space<vmem>>, %arg8: memref<16x128xf32, #tpu.memory_space<vmem>>, %arg9: memref<16x128xf32, #tpu.memory_space<vmem>>) attributes {dimension_semantics = [#tpu.dimension_semantics<arbitrary>], iteration_bounds = array<i64: 4>, scalar_prefetch = 0 : i64, scratch_operands = 2 : i64, tpu.core_type = #tpu.core_type<tc>, window_params = [{pipeline_mode = #tpu.pipeline_mode<synchronous>, transform_indices = @transform_0, window_bounds = array<i64: 16, 16>}, {transform_indices = @transform_1, window_bounds = array<i64: 1, 16, 4>}, {pipeline_mode = #tpu.pipeline_mode<synchronous>, transform_indices = @transform_2, window_bounds = array<i64: 16, 128>}, {pipeline_mode = #tpu.pipeline_mode<synchronous>, transform_indices = @transform_3, window_bounds = array<i64: 3, 128, 384>}, {pipeline_mode = #tpu.pipeline_mode<synchronous>, transform_indices = @transform_4, window_bounds = array<i64: 1, 384>}, {pipeline_mode = #tpu.pipeline_mode<synchronous>, transform_indices = @transform_5, window_bounds = array<i64: 3, 128, 128>}, {transform_indices = @transform_6, window_bounds = array<i64: 1, 16, 128>}]} {
    %c0_i32 = arith.constant 0 : i32
    %0 = arith.cmpi eq, %arg0, %c0_i32 : i32
    %1 = arith.extui %0 : i1 to i32
    %c0_i32_0 = arith.constant 0 : i32
    %2 = arith.cmpi ne, %1, %c0_i32_0 : i32
    scf.if %2 {
      %cst_49 = arith.constant 0.000000e+00 : f32
      %77 = vector.broadcast %cst_49 : f32 to vector<16x128xf32>
      %c0_50 = arith.constant 0 : index
      %c0_51 = arith.constant 0 : index
      %78 = vector.load %arg9[%c0_50, %c0_51] : memref<16x128xf32, #tpu.memory_space<vmem>>, vector<16x128xf32>
      tpu.vector_store %arg9[%c0_50, %c0_51], %77 {strides = array<i32>} : memref<16x128xf32, #tpu.memory_space<vmem>>, vector<16x128xf32>,
      %c0_52 = arith.constant 0 : index
      %c0_53 = arith.constant 0 : index
      %79 = vector.load %arg3[%c0_52, %c0_53] : memref<16x128xf32, #tpu.memory_space<vmem>>, vector<16x128xf32>
      %c0_54 = arith.constant 0 : index
      %c0_55 = arith.constant 0 : index
      %80 = vector.load %arg8[%c0_54, %c0_55] : memref<16x128xf32, #tpu.memory_space<vmem>>, vector<16x128xf32>
      tpu.vector_store %arg8[%c0_54, %c0_55], %79 {strides = array<i32>} : memref<16x128xf32, #tpu.memory_space<vmem>>, vector<16x128xf32>,
    } else {
    }
    %c0 = arith.constant 0 : index
    %c0_1 = arith.constant 0 : index
    %3 = vector.load %arg1[%c0, %c0_1] : memref<16x16xbf16, #tpu.memory_space<vmem>>, vector<16x16xbf16>
    %c0_2 = arith.constant 0 : index
    %c0_3 = arith.constant 0 : index
    %4 = vector.load %arg8[%c0_2, %c0_3] : memref<16x128xf32, #tpu.memory_space<vmem>>, vector<16x128xf32>
    %c0_4 = arith.constant 0 : index
    %c0_5 = arith.constant 0 : index
    %c0_6 = arith.constant 0 : index
    %5 = vector.load %arg2[%c0_4, %c0_5, %c0_6] : memref<1x16x4xf32, #tpu.memory_space<vmem>>, vector<1x16x4xf32>
    %6 = vector.shape_cast %5 : vector<1x16x4xf32> to vector<16x4xf32>
    %c0_7 = arith.constant 0 : index
    %c0_8 = arith.constant 0 : index
    %7 = vector.load %arg9[%c0_7, %c0_8] : memref<16x128xf32, #tpu.memory_space<vmem>>, vector<16x4xf32>
    tpu.vector_store %arg9[%c0_7, %c0_8], %6 {strides = array<i32>} : memref<16x128xf32, #tpu.memory_space<vmem>>, vector<16x4xf32>,
    %8 = vector.extract_strided_slice %4 {offsets = [0, 0], sizes = [16, 32], strides = [1, 1]} : vector<16x128xf32> to vector<16x32xf32>
    %c0_9 = arith.constant 0 : index
    %c4 = arith.constant 4 : index
    %9 = vector.load %arg9[%c0_9, %c4] : memref<16x128xf32, #tpu.memory_space<vmem>>, vector<16x32xf32>
    tpu.vector_store %arg9[%c0_9, %c4], %8 {strides = array<i32>} : memref<16x128xf32, #tpu.memory_space<vmem>>, vector<16x32xf32>,
    %c0_10 = arith.constant 0 : index
    %c0_11 = arith.constant 0 : index
    %10 = vector.load %arg9[%c0_10, %c0_11] : memref<16x128xf32, #tpu.memory_space<vmem>>, vector<16x128xf32>
    %11 = arith.truncf %10 : vector<16x128xf32> to vector<16x128xbf16>
    %c0_12 = arith.constant 0 : index
    %c0_13 = arith.constant 0 : index
    %c0_14 = arith.constant 0 : index
    %12 = vector.load %arg4[%c0_12, %c0_13, %c0_14] : memref<3x128x384xbf16, #tpu.memory_space<vmem>>, vector<1x128x384xbf16>
    %13 = vector.shape_cast %12 : vector<1x128x384xbf16> to vector<128x384xbf16>
    %cst = arith.constant dense<0.000000e+00> : vector<16x384xf32>
    %14 = tpu.matmul %11, %13, %cst {dimension_numbers = #tpu.dot_dimension_numbers<[1], [0], [0], [1], [0, 0, 1, 1], [], []>} : vector<16x128xbf16>, vector<128x384xbf16>, vector<16x384xf32> -> vector<16x384xf32>
    %cst_15 = arith.constant dense<0.000000e+00> : vector<16x128xf32>
    %15 = tpu.matmul %3, %11, %cst_15 {dimension_numbers = #tpu.dot_dimension_numbers<[1], [0], [0], [1], [0, 0, 1, 1], [], []>} : vector<16x16xbf16>, vector<16x128xbf16>, vector<16x128xf32> -> vector<16x128xf32>
    %16 = arith.truncf %15 : vector<16x128xf32> to vector<16x128xbf16>
    %c1 = arith.constant 1 : index
    %c0_16 = arith.constant 0 : index
    %c0_17 = arith.constant 0 : index
    %17 = vector.load %arg4[%c1, %c0_16, %c0_17] : memref<3x128x384xbf16, #tpu.memory_space<vmem>>, vector<1x128x384xbf16>
    %18 = vector.shape_cast %17 : vector<1x128x384xbf16> to vector<128x384xbf16>
    %cst_18 = arith.constant dense<0.000000e+00> : vector<16x384xf32>
    %19 = tpu.matmul %16, %18, %cst_18 {dimension_numbers = #tpu.dot_dimension_numbers<[1], [0], [0], [1], [0, 0, 1, 1], [], []>} : vector<16x128xbf16>, vector<128x384xbf16>, vector<16x384xf32> -> vector<16x384xf32>
    %20 = arith.addf %14, %19 : vector<16x384xf32>
    %cst_19 = arith.constant dense<0.000000e+00> : vector<16x128xf32>
    %21 = tpu.matmul %3, %16, %cst_19 {dimension_numbers = #tpu.dot_dimension_numbers<[1], [0], [0], [1], [0, 0, 1, 1], [], []>} : vector<16x16xbf16>, vector<16x128xbf16>, vector<16x128xf32> -> vector<16x128xf32>
    %cst_20 = arith.constant 2.000000e+00 : f32
    %22 = vector.broadcast %cst_20 : f32 to vector<16x128xf32>
    %23 = arith.mulf %22, %21 : vector<16x128xf32>
    %24 = arith.subf %23, %10 : vector<16x128xf32>
    %25 = arith.truncf %24 : vector<16x128xf32> to vector<16x128xbf16>
    %c2 = arith.constant 2 : index
    %c0_21 = arith.constant 0 : index
    %c0_22 = arith.constant 0 : index
    %26 = vector.load %arg4[%c2, %c0_21, %c0_22] : memref<3x128x384xbf16, #tpu.memory_space<vmem>>, vector<1x128x384xbf16>
    %27 = vector.shape_cast %26 : vector<1x128x384xbf16> to vector<128x384xbf16>
    %cst_23 = arith.constant dense<0.000000e+00> : vector<16x384xf32>
    %28 = tpu.matmul %25, %27, %cst_23 {dimension_numbers = #tpu.dot_dimension_numbers<[1], [0], [0], [1], [0, 0, 1, 1], [], []>} : vector<16x128xbf16>, vector<128x384xbf16>, vector<16x384xf32> -> vector<16x384xf32>
    %29 = arith.addf %20, %28 : vector<16x384xf32>
    %c0_24 = arith.constant 0 : index
    %c0_25 = arith.constant 0 : index
    %30 = vector.load %arg5[%c0_24, %c0_25] : memref<1x384xf32, #tpu.memory_space<vmem>>, vector<1x384xf32>
    %31 = vector.broadcast %30 : vector<1x384xf32> to vector<16x384xf32>
    %32 = arith.addf %29, %31 : vector<16x384xf32>
    %33 = vector.extract_strided_slice %32 {offsets = [0, 0], sizes = [16, 128], strides = [1, 1]} : vector<16x384xf32> to vector<16x128xf32>
    %34 = arith.negf %33 : vector<16x128xf32>
    %35 = math.exp %34 : vector<16x128xf32>
    %cst_26 = arith.constant 1.000000e+00 : f32
    %36 = vector.broadcast %cst_26 : f32 to vector<16x128xf32>
    %37 = arith.addf %36, %35 : vector<16x128xf32>
    %38 = arith.divf %36, %37 : vector<16x128xf32>
    %39 = vector.extract_strided_slice %32 {offsets = [0, 128], sizes = [16, 128], strides = [1, 1]} : vector<16x384xf32> to vector<16x128xf32>
    %40 = arith.negf %39 : vector<16x128xf32>
    %41 = math.exp %40 : vector<16x128xf32>
    %cst_27 = arith.constant 1.000000e+00 : f32
    %42 = vector.broadcast %cst_27 : f32 to vector<16x128xf32>
    %43 = arith.addf %42, %41 : vector<16x128xf32>
    %44 = arith.divf %42, %43 : vector<16x128xf32>
    %45 = vector.extract_strided_slice %32 {offsets = [0, 256], sizes = [16, 128], strides = [1, 1]} : vector<16x384xf32> to vector<16x128xf32>
    %46 = arith.mulf %4, %44 : vector<16x128xf32>
    %47 = arith.truncf %46 : vector<16x128xf32> to vector<16x128xbf16>
    %c0_28 = arith.constant 0 : index
    %c0_29 = arith.constant 0 : index
    %c0_30 = arith.constant 0 : index
    %48 = vector.load %arg6[%c0_28, %c0_29, %c0_30] : memref<3x128x128xbf16, #tpu.memory_space<vmem>>, vector<1x128x128xbf16>
    %49 = vector.shape_cast %48 : vector<1x128x128xbf16> to vector<128x128xbf16>
    %cst_31 = arith.constant dense<0.000000e+00> : vector<16x128xf32>
    %50 = tpu.matmul %47, %49, %cst_31 {dimension_numbers = #tpu.dot_dimension_numbers<[1], [0], [0], [1], [0, 0, 1, 1], [], []>} : vector<16x128xbf16>, vector<128x128xbf16>, vector<16x128xf32> -> vector<16x128xf32>
    %cst_32 = arith.constant dense<0.000000e+00> : vector<16x128xf32>
    %51 = tpu.matmul %3, %47, %cst_32 {dimension_numbers = #tpu.dot_dimension_numbers<[1], [0], [0], [1], [0, 0, 1, 1], [], []>} : vector<16x16xbf16>, vector<16x128xbf16>, vector<16x128xf32> -> vector<16x128xf32>
    %52 = arith.truncf %51 : vector<16x128xf32> to vector<16x128xbf16>
    %c1_33 = arith.constant 1 : index
    %c0_34 = arith.constant 0 : index
    %c0_35 = arith.constant 0 : index
    %53 = vector.load %arg6[%c1_33, %c0_34, %c0_35] : memref<3x128x128xbf16, #tpu.memory_space<vmem>>, vector<1x128x128xbf16>
    %54 = vector.shape_cast %53 : vector<1x128x128xbf16> to vector<128x128xbf16>
    %cst_36 = arith.constant dense<0.000000e+00> : vector<16x128xf32>
    %55 = tpu.matmul %52, %54, %cst_36 {dimension_numbers = #tpu.dot_dimension_numbers<[1], [0], [0], [1], [0, 0, 1, 1], [], []>} : vector<16x128xbf16>, vector<128x128xbf16>, vector<16x128xf32> -> vector<16x128xf32>
    %56 = arith.addf %50, %55 : vector<16x128xf32>
    %cst_37 = arith.constant dense<0.000000e+00> : vector<16x128xf32>
    %57 = tpu.matmul %3, %52, %cst_37 {dimension_numbers = #tpu.dot_dimension_numbers<[1], [0], [0], [1], [0, 0, 1, 1], [], []>} : vector<16x16xbf16>, vector<16x128xbf16>, vector<16x128xf32> -> vector<16x128xf32>
    %cst_38 = arith.constant 2.000000e+00 : f32
    %58 = vector.broadcast %cst_38 : f32 to vector<16x128xf32>
    %59 = arith.mulf %58, %57 : vector<16x128xf32>
    %60 = arith.subf %59, %46 : vector<16x128xf32>
    %61 = arith.truncf %60 : vector<16x128xf32> to vector<16x128xbf16>
    %c2_39 = arith.constant 2 : index
    %c0_40 = arith.constant 0 : index
    %c0_41 = arith.constant 0 : index
    %62 = vector.load %arg6[%c2_39, %c0_40, %c0_41] : memref<3x128x128xbf16, #tpu.memory_space<vmem>>, vector<1x128x128xbf16>
    %63 = vector.shape_cast %62 : vector<1x128x128xbf16> to vector<128x128xbf16>
    %cst_42 = arith.constant dense<0.000000e+00> : vector<16x128xf32>
    %64 = tpu.matmul %61, %63, %cst_42 {dimension_numbers = #tpu.dot_dimension_numbers<[1], [0], [0], [1], [0, 0, 1, 1], [], []>} : vector<16x128xbf16>, vector<128x128xbf16>, vector<16x128xf32> -> vector<16x128xf32>
    %65 = arith.addf %56, %64 : vector<16x128xf32>
    %66 = arith.mulf %38, %4 : vector<16x128xf32>
    %cst_43 = arith.constant 1.000000e+00 : f32
    %67 = vector.broadcast %cst_43 : f32 to vector<16x128xf32>
    %68 = arith.subf %67, %38 : vector<16x128xf32>
    %69 = arith.addf %45, %65 : vector<16x128xf32>
    %70 = math.tanh %69 : vector<16x128xf32>
    %71 = arith.mulf %68, %70 : vector<16x128xf32>
    %72 = arith.addf %66, %71 : vector<16x128xf32>
    %c0_44 = arith.constant 0 : index
    %c0_45 = arith.constant 0 : index
    %73 = vector.load %arg8[%c0_44, %c0_45] : memref<16x128xf32, #tpu.memory_space<vmem>>, vector<16x128xf32>
    tpu.vector_store %arg8[%c0_44, %c0_45], %72 {strides = array<i32>} : memref<16x128xf32, #tpu.memory_space<vmem>>, vector<16x128xf32>,
    %c0_46 = arith.constant 0 : index
    %c0_47 = arith.constant 0 : index
    %c0_48 = arith.constant 0 : index
    %74 = vector.load %arg7[%c0_46, %c0_47, %c0_48] : memref<1x16x128xf32, #tpu.memory_space<vmem>>, vector<1x16x128xf32>
    %75 = vector.shape_cast %74 : vector<1x16x128xf32> to vector<16x128xf32>
    %76 = vector.shape_cast %72 : vector<16x128xf32> to vector<1x16x128xf32>
    tpu.vector_store %arg7[%c0_46, %c0_47, %c0_48], %76 {strides = array<i32>} : memref<1x16x128xf32, #tpu.memory_space<vmem>>, vector<1x16x128xf32>,
    return
  }
  func.func @transform_0(%arg0: i32) -> (i32, i32) {
    %c0_i32 = arith.constant 0 : i32
    %c0_i32_0 = arith.constant 0 : i32
    %c0_i32_1 = arith.constant 0 : i32
    return %c0_i32, %c0_i32_0 : i32, i32
  }
  func.func @transform_1(%arg0: i32) -> (i32, i32, i32) {
    %c0_i32 = arith.constant 0 : i32
    %c0_i32_0 = arith.constant 0 : i32
    %c0_i32_1 = arith.constant 0 : i32
    return %arg0, %c0_i32, %c0_i32_0 : i32, i32, i32
  }
  func.func @transform_2(%arg0: i32) -> (i32, i32) {
    %c0_i32 = arith.constant 0 : i32
    %c0_i32_0 = arith.constant 0 : i32
    %c0_i32_1 = arith.constant 0 : i32
    return %c0_i32, %c0_i32_0 : i32, i32
  }
  func.func @transform_3(%arg0: i32) -> (i32, i32, i32) {
    %c0_i32 = arith.constant 0 : i32
    %c0_i32_0 = arith.constant 0 : i32
    %c0_i32_1 = arith.constant 0 : i32
    %c0_i32_2 = arith.constant 0 : i32
    return %c0_i32, %c0_i32_0, %c0_i32_1 : i32, i32, i32
  }
  func.func @transform_4(%arg0: i32) -> (i32, i32) {
    %c0_i32 = arith.constant 0 : i32
    %c0_i32_0 = arith.constant 0 : i32
    %c0_i32_1 = arith.constant 0 : i32
    return %c0_i32, %c0_i32_0 : i32, i32
  }
  func.func @transform_5(%arg0: i32) -> (i32, i32, i32) {
    %c0_i32 = arith.constant 0 : i32
    %c0_i32_0 = arith.constant 0 : i32
    %c0_i32_1 = arith.constant 0 : i32
    %c0_i32_2 = arith.constant 0 : i32
    return %c0_i32, %c0_i32_0, %c0_i32_1 : i32, i32, i32
  }
  func.func @transform_6(%arg0: i32) -> (i32, i32, i32) {
    %c0_i32 = arith.constant 0 : i32
    %c0_i32_0 = arith.constant 0 : i32
    %c0_i32_1 = arith.constant 0 : i32
    return %arg0, %c0_i32, %c0_i32_0 : i32, i32, i32
  }
}

</mosaic_0001>

<llo_original>
// kernel: tpu_custom_call.1
$region0: #{tpu_custom_call.1}
  #allocation0 [shape = 'u32[]', space=smem, size = 0x4, offset = 0x4, fixed_abs, tag = 'smem constant byte address 0x4 - core index']
  #allocation1 [shape = 'u32[144,128]{1,0:T(1,128)}', space=vmem, size = 0x12000, scoped, tag = 'internal scratch']
  #allocation2 [shape = 'f32[16,128]{1,0:T(8,128)}', space=vmem, size = 0x2000, scoped, tag = 'scratch operand']
  #allocation3 [shape = 'f32[16,128]{1,0:T(8,128)}', space=vmem, size = 0x2000, scoped, tag = 'scratch operand']
  %s0 = inlined_call_operand.vmem [shape: bf16[16,16], index: 0, kind: input, shape index: {}]
  %s1 = inlined_call_operand.vmem [shape: f32[4,16,4], index: 1, kind: input, shape index: {}]
  %s2 = inlined_call_operand.vmem [shape: f32[16,128], index: 2, kind: input, shape index: {}]
  %s3 = inlined_call_operand.hbm [shape: bf16[3,128,384], index: 3, kind: input, shape index: {}]
  %s4 = inlined_call_operand.vmem [shape: f32[1,384], index: 4, kind: input, shape index: {}]
  %s5 = inlined_call_operand.hbm [shape: bf16[3,128,128], index: 5, kind: input, shape index: {}]
  %s6 = inlined_call_operand.hbm [shape: f32[4,16,128], index: 6, kind: output, shape index: {}]
  %s7 = sld [smem:[#allocation0]]
  $region69: #{tpu_custom_call.1} parent=0
    _
  %s9 = ssub.s32 1, %s7
  %s10 = scalar_select 0, %s9, %s7
  $region1: #{tpu_custom_call.1} parent=0
    #allocation4 [shape = 'u8[294912]{0}', space=vmem, size = 0x48000, scoped, tag = 'input window, operand 3, single buffered']
    #allocation5 [shape = 's32[2]{0}', space=sflag, size = 0x8, scoped, tag = 'scoped memory for tpu_custom_call.1']
    #allocation6 [shape = 's32[2]{0}', space=sflag, size = 0x8, scoped, tag = 'scoped memory for tpu_custom_call.1']
    #allocation7 [shape = 'u8[98304]{0}', space=vmem, size = 0x18000, scoped, tag = 'input window, operand 5, single buffered']
    #allocation8 [shape = 's32[1]{0}', space=sflag, size = 0x4, scoped, tag = 'scoped memory for tpu_custom_call.1']
    #allocation9 [shape = 'u8[16384]{0}', space=vmem, size = 0x4000, scoped, tag = 'output window, operand 0']
    %11 = vsyncpa [#allocation5], 0
    %12 = vsyncpa [#allocation8], 0
    %13 = vsyncpa [#allocation6], 0
    %s14 = scalar_lea.sflag [#allocation6], 1
    %15 = vsyncpa %s14, 0
    loop: start=0, step=1, limit=6
    $region2: #{tpu_custom_call.1} parent=1 // loop_pre_header
      _
    $region3: #{tpu_custom_call.1} parent=1 // loop_header
      %s17 = sphi 0, %s21
      %p18 = scmp.ge.s32.totalorder %s17, 6
      %s25 = sphi 0, %s25
      %s27 = sphi 0, %s25
      %s28 = sphi 0, %s27
      %s42 = sphi 0, %s28
      %s48 = sphi 0, %s50
      %s51 = sphi 0, %s48
      %s52 = sphi 0, %s51
      %s68 = sphi 0, %s52
      %s72 = sphi 0, %s72
      %s74 = sphi 0, %s72
      %s75 = sphi 0, %s74
      %s89 = sphi 0, %s75
      %s93 = sphi 0, %s93
      %s95 = sphi 0, %s93
      %s96 = sphi 0, %s95
      %s110 = sphi 0, %s96
      %s114 = sphi 0, %s114
      %s116 = sphi 0, %s114
      %s117 = sphi 0, %s116
      %s131 = sphi 0, %s117
      %s135 = sphi 0, %s135
      %s137 = sphi 0, %s135
      %s138 = sphi 0, %s137
      %s152 = sphi 0, %s138
      %s158 = sphi 0, %s160
      %s161 = sphi 0, %s158
      %s162 = sphi 0, %s161
      %s178 = sphi 0, %s162
    $region4: #{tpu_custom_call.1} parent=1 // loop_header_branch
      %20 = sbr.rel (%p18) target = $region8
    $region5: #{tpu_custom_call.1} parent=1 // loop_body
      %s22 = ssub.s32 %s17, 1
      %s23 = ssub.s32 %s17, 2
      %s24 = sadd.s32 %s17, 1
      %s26 = sadd.s32 %s25, 1
      %p29 = scmp.eq.s32.totalorder %s17, 3
      %p30 = scmp.ne.s32.totalorder %s25, %s27
      %p31 = scmp.eq.s32.totalorder %s17, 0
      %p32 = por %p30, %p31
      %p33 = scmp.ne.s32.totalorder %s25, %s27
      %p34 = scmp.eq.s32.totalorder %s22, 3
      %p35 = por %p33, %p34
      %p36 = scmp.ne.s32.totalorder %s27, %s28
      %p37 = scmp.eq.s32.totalorder %s22, 0
      %p38 = por %p36, %p37
      %p39 = scmp.ne.s32.totalorder %s27, %s28
      %p40 = scmp.eq.s32.totalorder %s23, 3
      %p41 = por %p39, %p40
      %p43 = scmp.ne.s32.totalorder %s28, %s42
      %p44 = scmp.eq.s32.totalorder %s23, 0
      %p45 = por %p43, %p44
      %s46 = ssub.s32 %s17, %s24
      %p47 = scmp.eq.s32.totalorder %s46, 0
      %s49 = sadd.s32 %s48, 1
      %s50 = scalar_select %p47, %s48, %s49
      %p53 = pneg %p47
      %p54 = scmp.eq.s32.totalorder %s17, 3
      %p55 = por %p53, %p54
      %p56 = scmp.ne.s32.totalorder %s48, %s51
      %p57 = scmp.eq.s32.totalorder %s17, 0
      %p58 = por %p56, %p57
      %p59 = scmp.ne.s32.totalorder %s48, %s51
      %p60 = scmp.eq.s32.totalorder %s22, 3
      %p61 = por %p59, %p60
      %p62 = scmp.ne.s32.totalorder %s51, %s52
      %p63 = scmp.eq.s32.totalorder %s22, 0
      %p64 = por %p62, %p63
      %p65 = scmp.ne.s32.totalorder %s51, %s52
      %p66 = scmp.eq.s32.totalorder %s23, 3
      %p67 = por %p65, %p66
      %p69 = scmp.ne.s32.totalorder %s52, %s68
      %p70 = scmp.eq.s32.totalorder %s23, 0
      %p71 = por %p69, %p70
      %s73 = sadd.s32 %s72, 1
      %p76 = scmp.eq.s32.totalorder %s17, 3
      %p77 = scmp.ne.s32.totalorder %s72, %s74
      %p78 = scmp.eq.s32.totalorder %s17, 0
      %p79 = por %p77, %p78
      %p80 = scmp.ne.s32.totalorder %s72, %s74
      %p81 = scmp.eq.s32.totalorder %s22, 3
      %p82 = por %p80, %p81
      %p83 = scmp.ne.s32.totalorder %s74, %s75
      %p84 = scmp.eq.s32.totalorder %s22, 0
      %p85 = por %p83, %p84
      %p86 = scmp.ne.s32.totalorder %s74, %s75
      %p87 = scmp.eq.s32.totalorder %s23, 3
      %p88 = por %p86, %p87
      %p90 = scmp.ne.s32.totalorder %s75, %s89
      %p91 = scmp.eq.s32.totalorder %s23, 0
      %p92 = por %p90, %p91
      %s94 = sadd.s32 %s93, 1
      %p97 = scmp.eq.s32.totalorder %s17, 3
      %p98 = scmp.ne.s32.totalorder %s93, %s95
      %p99 = scmp.eq.s32.totalorder %s17, 0
      %p100 = por %p98, %p99
      %p101 = scmp.ne.s32.totalorder %s93, %s95
      %p102 = scmp.eq.s32.totalorder %s22, 3
      %p103 = por %p101, %p102
      %p104 = scmp.ne.s32.totalorder %s95, %s96
      %p105 = scmp.eq.s32.totalorder %s22, 0
      %p106 = por %p104, %p105
      %p107 = scmp.ne.s32.totalorder %s95, %s96
      %p108 = scmp.eq.s32.totalorder %s23, 3
      %p109 = por %p107, %p108
      %p111 = scmp.ne.s32.totalorder %s96, %s110
      %p112 = scmp.eq.s32.totalorder %s23, 0
      %p113 = por %p111, %p112
      %s115 = sadd.s32 %s114, 1
      %p118 = scmp.eq.s32.totalorder %s17, 3
      %p119 = scmp.ne.s32.totalorder %s114, %s116
      %p120 = scmp.eq.s32.totalorder %s17, 0
      %p121 = por %p119, %p120
      %p122 = scmp.ne.s32.totalorder %s114, %s116
      %p123 = scmp.eq.s32.totalorder %s22, 3
      %p124 = por %p122, %p123
      %p125 = scmp.ne.s32.totalorder %s116, %s117
      %p126 = scmp.eq.s32.totalorder %s22, 0
      %p127 = por %p125, %p126
      %p128 = scmp.ne.s32.totalorder %s116, %s117
      %p129 = scmp.eq.s32.totalorder %s23, 3
      %p130 = por %p128, %p129
      %p132 = scmp.ne.s32.totalorder %s117, %s131
      %p133 = scmp.eq.s32.totalorder %s23, 0
      %p134 = por %p132, %p133
      %s136 = sadd.s32 %s135, 1
      %p139 = scmp.eq.s32.totalorder %s17, 3
      %p140 = scmp.ne.s32.totalorder %s135, %s137
      %p141 = scmp.eq.s32.totalorder %s17, 0
      %p142 = por %p140, %p141
      %p143 = scmp.ne.s32.totalorder %s135, %s137
      %p144 = scmp.eq.s32.totalorder %s22, 3
      %p145 = por %p143, %p144
      %p146 = scmp.ne.s32.totalorder %s137, %s138
      %p147 = scmp.eq.s32.totalorder %s22, 0
      %p148 = por %p146, %p147
      %p149 = scmp.ne.s32.totalorder %s137, %s138
      %p150 = scmp.eq.s32.totalorder %s23, 3
      %p151 = por %p149, %p150
      %p153 = scmp.ne.s32.totalorder %s138, %s152
      %p154 = scmp.eq.s32.totalorder %s23, 0
      %p155 = por %p153, %p154
      %s156 = ssub.s32 %s17, %s24
      %p157 = scmp.eq.s32.totalorder %s156, 0
      %s159 = sadd.s32 %s158, 1
      %s160 = scalar_select %p157, %s158, %s159
      %p163 = pneg %p157
      %p164 = scmp.eq.s32.totalorder %s17, 3
      %p165 = por %p163, %p164
      %p166 = scmp.ne.s32.totalorder %s158, %s161
      %p167 = scmp.eq.s32.totalorder %s17, 0
      %p168 = por %p166, %p167
      %p169 = scmp.ne.s32.totalorder %s158, %s161
      %p170 = scmp.eq.s32.totalorder %s22, 3
      %p171 = por %p169, %p170
      %p172 = scmp.ne.s32.totalorder %s161, %s162
      %p173 = scmp.eq.s32.totalorder %s22, 0
      %p174 = por %p172, %p173
      %p175 = scmp.ne.s32.totalorder %s161, %s162
      %p176 = scmp.eq.s32.totalorder %s23, 3
      %p177 = por %p175, %p176
      %p179 = scmp.ne.s32.totalorder %s162, %s178
      %p180 = scmp.eq.s32.totalorder %s23, 0
      %p181 = por %p179, %p180
      %p182 = scmp.le.s32.totalorder 1, %s17
      %p183 = scmp.lt.s32.totalorder %s17, 5
      %p184 = pnand %p182, %p183
      %p185 = pneg %p184
      // Predicated region
      $region9: #{tpu_custom_call.1} parent=5 // pred_check
        _
      $region10: #{tpu_custom_call.1} parent=5 // pred_check_branch
        %187 = sbr.rel (%p184) target = $region12
      $region11: #{tpu_custom_call.1} parent=5 // pred_region
        %s188 = ssub.s32 %s17, 1
        // Predicated region
        $region13: #{tpu_custom_call.1} parent=11 // pred_check
          %p189 = pneg %p38
        $region14: #{tpu_custom_call.1} parent=11 // pred_check_branch
          %191 = sbr.rel (%p189) target = $region16
        $region15: #{tpu_custom_call.1} parent=11 // pred_region
          _
        $region16: #{tpu_custom_call.1} parent=11 // pred_fallthru
          _
        // Predicated region
        $region17: #{tpu_custom_call.1} parent=11 // pred_check
          %p192 = pneg %p85
        $region18: #{tpu_custom_call.1} parent=11 // pred_check_branch
          %194 = sbr.rel (%p192) target = $region20
        $region19: #{tpu_custom_call.1} parent=11 // pred_region
          _
        $region20: #{tpu_custom_call.1} parent=11 // pred_fallthru
          _
        // Predicated region
        $region21: #{tpu_custom_call.1} parent=11 // pred_check
          %p195 = pneg %p106
        $region22: #{tpu_custom_call.1} parent=11 // pred_check_branch
          %197 = sbr.rel (%p195) target = $region24
        $region23: #{tpu_custom_call.1} parent=11 // pred_region
          %s199 = ssub.s32 9216, 9216
          %200 = vsyncadd [#allocation5], %s199
          %s201 = sshll.u32 [#allocation4], 4
          %s202 = int_to_ptr.vmem [resolvable:$true] %s201
          %207 = dma.hbm_to_vmem [thread:$0]  %s3, 9216, %s202, [#allocation5], 192, 192, 12
        $region24: #{tpu_custom_call.1} parent=11 // pred_fallthru
          _
        // Predicated region
        $region25: #{tpu_custom_call.1} parent=11 // pred_check
          %p208 = pneg %p127
        $region26: #{tpu_custom_call.1} parent=11 // pred_check_branch
          %210 = sbr.rel (%p208) target = $region28
        $region27: #{tpu_custom_call.1} parent=11 // pred_region
          _
        $region28: #{tpu_custom_call.1} parent=11 // pred_fallthru
          _
        // Predicated region
        $region29: #{tpu_custom_call.1} parent=11 // pred_check
          %p211 = pneg %p148
        $region30: #{tpu_custom_call.1} parent=11 // pred_check_branch
          %213 = sbr.rel (%p211) target = $region32
        $region31: #{tpu_custom_call.1} parent=11 // pred_region
          %s215 = ssub.s32 3072, 3072
          %216 = vsyncadd [#allocation8], %s215
          %s217 = sshll.u32 [#allocation7], 4
          %s218 = int_to_ptr.vmem [resolvable:$true] %s217
          %223 = dma.hbm_to_vmem [thread:$0]  %s5, 3072, %s218, [#allocation8], 64, 64, 4
        $region32: #{tpu_custom_call.1} parent=11 // pred_fallthru
          _
      $region12: #{tpu_custom_call.1} parent=5 // pred_fallthru
        _
      %p224 = scmp.lt.s32.totalorder %s17, 4
      // Predicated region
      $region33: #{tpu_custom_call.1} parent=5 // pred_check
        %p225 = pneg %p224
      $region34: #{tpu_custom_call.1} parent=5 // pred_check_branch
        %227 = sbr.rel (%p225) target = $region36
      $region35: #{tpu_custom_call.1} parent=5 // pred_region
        // Predicated region
        $region37: #{tpu_custom_call.1} parent=35 // pred_check
          %p228 = pneg %p58
        $region38: #{tpu_custom_call.1} parent=35 // pred_check_branch
          %230 = sbr.rel (%p228) target = $region40
        $region39: #{tpu_custom_call.1} parent=35 // pred_region
          %p231 = scmp.lt.s32.totalorder %s17, 3
          %s232 = scalar_select %p231, %s17, 3
          %s233 = smul.addr %s232, 2
          %s234 = smul.addr %s233, 8
          %s235 = scalar_lea.vmem %s1, %s234
        $region40: #{tpu_custom_call.1} parent=35 // pred_fallthru
          _
      $region36: #{tpu_custom_call.1} parent=5 // pred_fallthru
        _
      %p236 = scmp.le.s32.totalorder 1, %s17
      %p237 = scmp.lt.s32.totalorder %s17, 5
      %p238 = pnand %p236, %p237
      %p239 = pneg %p238
      // Predicated region
      $region41: #{tpu_custom_call.1} parent=5 // pred_check
        _
      $region42: #{tpu_custom_call.1} parent=5 // pred_check_branch
        %241 = sbr.rel (%p238) target = $region44
      $region43: #{tpu_custom_call.1} parent=5 // pred_region
        %s242 = ssub.s32 %s17, 1
        // Predicated region
        $region45: #{tpu_custom_call.1} parent=43 // pred_check
          %p243 = pneg %p106
        $region46: #{tpu_custom_call.1} parent=43 // pred_check_branch
          %245 = sbr.rel (%p243) target = $region48
        $region47: #{tpu_custom_call.1} parent=43 // pred_region
          %246 = dma.done [#allocation5], 9216
        $region48: #{tpu_custom_call.1} parent=43 // pred_fallthru
          _
        // Predicated region
        $region49: #{tpu_custom_call.1} parent=43 // pred_check
          %p247 = pneg %p148
        $region50: #{tpu_custom_call.1} parent=43 // pred_check_branch
          %249 = sbr.rel (%p247) target = $region52
        $region51: #{tpu_custom_call.1} parent=43 // pred_region
          %250 = dma.done [#allocation8], 3072
        $region52: #{tpu_custom_call.1} parent=43 // pred_fallthru
          _
        %p251 = pneg %p38
        %p252 = pneg %p35
        %p253 = scmp.lt.s32.totalorder %s22, 3
        %s254 = scalar_select %p253, %s22, 3
        %s255 = smul.addr %s254, 2
        %s256 = smul.addr %s255, 8
        %s257 = scalar_lea.vmem %s1, %s256
        %p258 = pneg %p64
        %p259 = pneg %p61
        %p260 = pneg %p85
        %p261 = pneg %p82
        %p262 = pneg %p106
        %p263 = pneg %p103
        %p264 = pneg %p127
        %p265 = pneg %p124
        %p266 = pneg %p148
        %p267 = pneg %p145
        %p268 = pneg %p174
        %p269 = pneg %p171
        %s270 = sand.u32 %s161, 1
        %s271 = scalar_lea.sflag [#allocation6], %s270
        %s272 = sand.u32 %s161, 1
        %s273 = smul.addr %s272, 16
        %s274 = scalar_lea.vmem [#allocation9], %s273
        %p275 = scmp.lt.s32.totalorder %s22, 3
        %s276 = scalar_select %p275, %s22, 3
        %s277 = smul.addr %s276, 2
        %s278 = smul.addr %s277, 8
        %s279 = scalar_lea.vmem %s1, %s278
        %p281 = scmp.eq.s32.totalorder %s22, 0
        // Predicated region
        $region53: #{tpu_custom_call.1} parent=43 // pred_check
          %p282 = pneg %p281
        $region54: #{tpu_custom_call.1} parent=43 // pred_check_branch
          %284 = sbr.rel (%p282) target = $region56
        $region55: #{tpu_custom_call.1} parent=43 // pred_region
          %285 = vst [vmem:[#allocation3] sm:$0xff] 0.0
          %286 = vst [vmem:[#allocation3 + $0x8] sm:$0xff] 0.0
          %v287 = vld [vmem:[%s2] sm:$0xff]
          %v288 = vld [vmem:[%s2 + $0x8] sm:$0xff]
          %289 = vst [vmem:[#allocation2] sm:$0xff] %v287
          %290 = vst [vmem:[#allocation2 + $0x8] sm:$0xff] %v288
        $region56: #{tpu_custom_call.1} parent=43 // pred_fallthru
          _
        %v291 = vld [vmem:[%s0] sm:$0xf]
        %v292 = vld [vmem:[%s0 + $0x4] sm:$0xf]
        %v293 = vld [vmem:[#allocation2] sm:$0xff]
        %v294 = vld [vmem:[#allocation2 + $0x8] sm:$0xff]
        %v295 = vld [vmem:[%s279] sm:$0xff]
        %v296 = vld [vmem:[%s279 + $0x8] sm:$0xff]
        %vm297 = vcmask 31744
        %298 = vst.msk [vmem:[#allocation3] sm:$0xff] %vm297, %v295
        %299 = vst.msk [vmem:[#allocation3 + $0x8] sm:$0xff] %vm297, %v296
        %302 = vrot.lane.b32.xlu0 %v293, 4
        %v303 = vpop.permute.xlu0 %302
        %304 = vrot.lane.b32.xlu0 %v294, 4
        %v305 = vpop.permute.xlu0 %304
        %vm308 = vcmask 293920
        %309 = vst.msk [vmem:[#allocation3] sm:$0xff] %vm308, %v303
        %310 = vst.msk [vmem:[#allocation3 + $0x8] sm:$0xff] %vm308, %v305
        %v311 = vld [vmem:[#allocation3] sm:$0xff]
        %v312 = vld [vmem:[#allocation3 + $0x8] sm:$0xff]
        %v313 = vpack.c.bf16 %v312, %v311
        %v314 = vld [vmem:[#allocation4] sm:$0xff]
        %v315 = vld [vmem:[#allocation4 + $0x8] sm:$0xf]
        %v316 = vld [vmem:[#allocation4 + $0xc] sm:$0xff]
        %v317 = vld [vmem:[#allocation4 + $0x14] sm:$0xf]
        %v318 = vld [vmem:[#allocation4 + $0x18] sm:$0xff]
        %v319 = vld [vmem:[#allocation4 + $0x20] sm:$0xf]
        %v320 = vld [vmem:[#allocation4 + $0x24] sm:$0xff]
        %v321 = vld [vmem:[#allocation4 + $0x2c] sm:$0xf]
        %v322 = vld [vmem:[#allocation4 + $0x30] sm:$0xff]
        %v323 = vld [vmem:[#allocation4 + $0x38] sm:$0xf]
        %v324 = vld [vmem:[#allocation4 + $0x3c] sm:$0xff]
        %v325 = vld [vmem:[#allocation4 + $0x44] sm:$0xf]
        %v326 = vld [vmem:[#allocation4 + $0x48] sm:$0xff]
        %v327 = vld [vmem:[#allocation4 + $0x50] sm:$0xf]
        %v328 = vld [vmem:[#allocation4 + $0x54] sm:$0xff]
        %v329 = vld [vmem:[#allocation4 + $0x5c] sm:$0xf]
        %v330 = vld [vmem:[#allocation4 + $0x60] sm:$0xff]
        %v331 = vld [vmem:[#allocation4 + $0x68] sm:$0xf]
        %v332 = vld [vmem:[#allocation4 + $0x6c] sm:$0xff]
        %v333 = vld [vmem:[#allocation4 + $0x74] sm:$0xf]
        %v334 = vld [vmem:[#allocation4 + $0x78] sm:$0xff]
        %v335 = vld [vmem:[#allocation4 + $0x80] sm:$0xf]
        %v336 = vld [vmem:[#allocation4 + $0x84] sm:$0xff]
        %v337 = vld [vmem:[#allocation4 + $0x8c] sm:$0xf]
        %v338 = vld [vmem:[#allocation4 + $0x90] sm:$0xff]
        %v339 = vld [vmem:[#allocation4 + $0x98] sm:$0xf]
        %v340 = vld [vmem:[#allocation4 + $0x9c] sm:$0xff]
        %v341 = vld [vmem:[#allocation4 + $0xa4] sm:$0xf]
        %v342 = vld [vmem:[#allocation4 + $0xa8] sm:$0xff]
        %v343 = vld [vmem:[#allocation4 + $0xb0] sm:$0xf]
        %v344 = vld [vmem:[#allocation4 + $0xb4] sm:$0xff]
        %v345 = vld [vmem:[#allocation4 + $0xbc] sm:$0xf]
        %v348 = vunpack.c.l.b16 %v291
        %v349 = vunpack.c.l.b16 %v292
        %v350 = vpack.c.b16 %v349, %v348
        %vm351 = vcmask 130048
        %v353 = vsel %vm351, %v350, 0
        %355 = vmatprep.subr.bf16.mxu0 0
        %356 = vmatpush1.bf16.msra.mxu0 0
        %357 = vmatprep.subr.bf16.mxu0 0
        %358 = vmatpush1.bf16.msra.mxu0 0
        %359 = vmatprep.subr.bf16.mxu0 0
        %360 = vmatpush1.bf16.msra.mxu0 0
        %361 = vmatprep.subr.bf16.mxu0 0
        %362 = vmatpush1.bf16.msra.mxu0 0
        %363 = vmatprep.subr.bf16.mxu0 0
        %364 = vmatpush1.bf16.msra.mxu0 0
        %365 = vmatprep.subr.bf16.mxu0 0
        %366 = vmatpush1.bf16.msra.mxu0 0
        %367 = vmatprep.subr.bf16.mxu0 0
        %368 = vmatpush1.bf16.msra.mxu0 0
        %369 = vmatprep.subr.bf16.mxu0 0
        %370 = vmatpush1.bf16.msra.mxu0 %v313
        %371 = vmatprep.subr.bf16.mxu0 0
        %372 = vmatpush2.bf16.msra.mxu0 0
        %373 = vmatprep.subr.bf16.mxu0 0
        %374 = vmatpush2.bf16.msra.mxu0 0
        %375 = vmatprep.subr.bf16.mxu0 0
        %376 = vmatpush2.bf16.msra.mxu0 0
        %377 = vmatprep.subr.bf16.mxu0 0
        %378 = vmatpush2.bf16.msra.mxu0 0
        %379 = vmatprep.subr.bf16.mxu0 0
        %380 = vmatpush2.bf16.msra.mxu0 0
        %381 = vmatprep.subr.bf16.mxu0 0
        %382 = vmatpush2.bf16.msra.mxu0 0
        %383 = vmatprep.subr.bf16.mxu0 0
        %384 = vmatpush2.bf16.msra.mxu0 0
        %385 = vmatprep.subr.bf16.mxu0 0
        %386 = vmatpush2.bf16.msra.mxu0 0
        %387 = vmatprep.mubr.bf16.mxu0 0
        %388 = vmatmul.mubr.bf16.gmra.mxu0 %v353
        %v389 = vpop.f32.mrf.mxu0
        %v390 = vadd.f32 0.0, %v389
        %v391 = vpop.f32.mrf.mxu0
        %v392 = vpop.f32.mrf.mxu0
        %v393 = vadd.f32 0.0, %v392
        %v394 = vpop.f32.mrf.mxu0
        %395 = vdwg.mxu0
        %v396 = vpack.c.bf16 %v393, %v390
        %s397 = scalar_lea.vmem [#allocation4], 192
        %v398 = vld [vmem:[%s397] sm:$0xff]
        %v399 = vld [vmem:[%s397 + $0x8] sm:$0xf]
        %v400 = vld [vmem:[%s397 + $0xc] sm:$0xff]
        %v401 = vld [vmem:[%s397 + $0x14] sm:$0xf]
        %v402 = vld [vmem:[%s397 + $0x18] sm:$0xff]
        %v403 = vld [vmem:[%s397 + $0x20] sm:$0xf]
        %v404 = vld [vmem:[%s397 + $0x24] sm:$0xff]
        %v405 = vld [vmem:[%s397 + $0x2c] sm:$0xf]
        %v406 = vld [vmem:[%s397 + $0x30] sm:$0xff]
        %v407 = vld [vmem:[%s397 + $0x38] sm:$0xf]
        %v408 = vld [vmem:[%s397 + $0x3c] sm:$0xff]
        %v409 = vld [vmem:[%s397 + $0x44] sm:$0xf]
        %v410 = vld [vmem:[%s397 + $0x48] sm:$0xff]
        %v411 = vld [vmem:[%s397 + $0x50] sm:$0xf]
        %v412 = vld [vmem:[%s397 + $0x54] sm:$0xff]
        %v413 = vld [vmem:[%s397 + $0x5c] sm:$0xf]
        %v414 = vld [vmem:[%s397 + $0x60] sm:$0xff]
        %v415 = vld [vmem:[%s397 + $0x68] sm:$0xf]
        %v416 = vld [vmem:[%s397 + $0x6c] sm:$0xff]
        %v417 = vld [vmem:[%s397 + $0x74] sm:$0xf]
        %v418 = vld [vmem:[%s397 + $0x78] sm:$0xff]
        %v419 = vld [vmem:[%s397 + $0x80] sm:$0xf]
        %v420 = vld [vmem:[%s397 + $0x84] sm:$0xff]
        %v421 = vld [vmem:[%s397 + $0x8c] sm:$0xf]
        %v422 = vld [vmem:[%s397 + $0x90] sm:$0xff]
        %v423 = vld [vmem:[%s397 + $0x98] sm:$0xf]
        %v424 = vld [vmem:[%s397 + $0x9c] sm:$0xff]
        %v425 = vld [vmem:[%s397 + $0xa4] sm:$0xf]
        %v426 = vld [vmem:[%s397 + $0xa8] sm:$0xff]
        %v427 = vld [vmem:[%s397 + $0xb0] sm:$0xf]
        %v428 = vld [vmem:[%s397 + $0xb4] sm:$0xff]
        %v429 = vld [vmem:[%s397 + $0xbc] sm:$0xf]
        %v462 = vunpack.c.l.b16 %v398
        %v463 = vunpack.c.h.b16 %v398
        %v464 = vunpack.c.l.b16 %v399
        %v465 = vunpack.c.l.b16 %v400
        %v466 = vunpack.c.h.b16 %v400
        %v467 = vunpack.c.l.b16 %v401
        %v468 = vunpack.c.l.b16 %v402
        %v469 = vunpack.c.h.b16 %v402
        %v470 = vunpack.c.l.b16 %v403
        %v471 = vunpack.c.l.b16 %v404
        %v472 = vunpack.c.h.b16 %v404
        %v473 = vunpack.c.l.b16 %v405
        %v474 = vunpack.c.l.b16 %v406
        %v475 = vunpack.c.h.b16 %v406
        %v476 = vunpack.c.l.b16 %v407
        %v477 = vunpack.c.l.b16 %v408
        %v478 = vunpack.c.h.b16 %v408
        %v479 = vunpack.c.l.b16 %v409
        %v480 = vunpack.c.l.b16 %v410
        %v481 = vunpack.c.h.b16 %v410
        %v482 = vunpack.c.l.b16 %v411
        %v483 = vunpack.c.l.b16 %v412
        %v484 = vunpack.c.h.b16 %v412
        %v485 = vunpack.c.l.b16 %v413
        %v486 = vunpack.c.l.b16 %v414
        %v487 = vunpack.c.h.b16 %v414
        %v488 = vunpack.c.l.b16 %v415
        %v489 = vunpack.c.l.b16 %v416
        %v490 = vunpack.c.h.b16 %v416
        %v491 = vunpack.c.l.b16 %v417
        %v492 = vunpack.c.l.b16 %v418
        %v493 = vunpack.c.h.b16 %v418
        %v494 = vunpack.c.l.b16 %v419
        %v495 = vunpack.c.l.b16 %v420
        %v496 = vunpack.c.h.b16 %v420
        %v497 = vunpack.c.l.b16 %v421
        %v498 = vunpack.c.l.b16 %v422
        %v499 = vunpack.c.h.b16 %v422
        %v500 = vunpack.c.l.b16 %v423
        %v501 = vunpack.c.l.b16 %v424
        %v502 = vunpack.c.h.b16 %v424
        %v503 = vunpack.c.l.b16 %v425
        %v504 = vunpack.c.l.b16 %v426
        %v505 = vunpack.c.h.b16 %v426
        %v506 = vunpack.c.l.b16 %v427
        %v507 = vunpack.c.l.b16 %v428
        %v508 = vunpack.c.h.b16 %v428
        %v509 = vunpack.c.l.b16 %v429
        %v510 = vpack.c.b16 %v465, %v462
        %v511 = vpack.c.b16 %v466, %v463
        %v512 = vpack.c.b16 %v467, %v464
        %v513 = vpack.c.b16 %v471, %v468
        %v514 = vpack.c.b16 %v472, %v469
        %v515 = vpack.c.b16 %v473, %v470
        %v516 = vpack.c.b16 %v477, %v474
        %v517 = vpack.c.b16 %v478, %v475
        %v518 = vpack.c.b16 %v479, %v476
        %v519 = vpack.c.b16 %v483, %v480
        %v520 = vpack.c.b16 %v484, %v481
        %v521 = vpack.c.b16 %v485, %v482
        %v522 = vpack.c.b16 %v489, %v486
        %v523 = vpack.c.b16 %v490, %v487
        %v524 = vpack.c.b16 %v491, %v488
        %v525 = vpack.c.b16 %v495, %v492
        %v526 = vpack.c.b16 %v496, %v493
        %v527 = vpack.c.b16 %v497, %v494
        %v528 = vpack.c.b16 %v501, %v498
        %v529 = vpack.c.b16 %v502, %v499
        %v530 = vpack.c.b16 %v503, %v500
        %v531 = vpack.c.b16 %v507, %v504
        %v532 = vpack.c.b16 %v508, %v505
        %v533 = vpack.c.b16 %v509, %v506
        %558 = vmatprep.subr.bf16.mxu0 %v532
        %559 = vmatpush1.bf16.msra.mxu0 %v531
        %560 = vmatprep.subr.bf16.mxu0 %v529
        %561 = vmatpush1.bf16.msra.mxu0 %v528
        %562 = vmatprep.subr.bf16.mxu0 %v526
        %563 = vmatpush1.bf16.msra.mxu0 %v525
        %564 = vmatprep.subr.bf16.mxu0 %v523
        %565 = vmatpush1.bf16.msra.mxu0 %v522
        %566 = vmatprep.subr.bf16.mxu0 %v520
        %567 = vmatpush1.bf16.msra.mxu0 %v519
        %568 = vmatprep.subr.bf16.mxu0 %v517
        %569 = vmatpush1.bf16.msra.mxu0 %v516
        %570 = vmatprep.subr.bf16.mxu0 %v514
        %571 = vmatpush1.bf16.msra.mxu0 %v513
        %572 = vmatprep.subr.bf16.mxu0 %v511
        %573 = vmatpush1.bf16.msra.mxu0 %v510
        %574 = vmatprep.subr.bf16.mxu0 0
        %575 = vmatpush2.bf16.msra.mxu0 0
        %576 = vmatprep.subr.bf16.mxu0 0
        %577 = vmatpush2.bf16.msra.mxu0 0
        %578 = vmatprep.subr.bf16.mxu0 0
        %579 = vmatpush2.bf16.msra.mxu0 0
        %580 = vmatprep.subr.bf16.mxu0 0
        %581 = vmatpush2.bf16.msra.mxu0 0
        %582 = vmatprep.subr.bf16.mxu0 0
        %583 = vmatpush2.bf16.msra.mxu0 0
        %584 = vmatprep.subr.bf16.mxu0 0
        %585 = vmatpush2.bf16.msra.mxu0 0
        %586 = vmatprep.subr.bf16.mxu0 0
        %587 = vmatpush2.bf16.msra.mxu0 0
        %588 = vmatprep.subr.bf16.mxu0 0
        %589 = vmatpush2.bf16.msra.mxu0 0
        %590 = vmatprep.mubr.bf16.mxu0 0
        %591 = vmatmul.mubr.bf16.gmra.mxu0 %v396
        %v592 = vpop.f32.mrf.mxu0
        %v593 = vadd.f32 0.0, %v592
        %v594 = vpop.f32.mrf.mxu0
        %v595 = vadd.f32 0.0, %v594
        %v596 = vpop.f32.mrf.mxu0
        %v597 = vadd.f32 0.0, %v596
        %v598 = vpop.f32.mrf.mxu0
        %v599 = vadd.f32 0.0, %v598
        %600 = vdwg.mxu0
        %601 = vmatprep.subr.bf16.mxu0 0
        %602 = vmatpush1.bf16.msra.mxu0 %v533
        %603 = vmatprep.subr.bf16.mxu0 0
        %604 = vmatpush1.bf16.msra.mxu0 %v530
        %605 = vmatprep.subr.bf16.mxu0 0
        %606 = vmatpush1.bf16.msra.mxu0 %v527
        %607 = vmatprep.subr.bf16.mxu0 0
        %608 = vmatpush1.bf16.msra.mxu0 %v524
        %609 = vmatprep.subr.bf16.mxu0 0
        %610 = vmatpush1.bf16.msra.mxu0 %v521
        %611 = vmatprep.subr.bf16.mxu0 0
        %612 = vmatpush1.bf16.msra.mxu0 %v518
        %613 = vmatprep.subr.bf16.mxu0 0
        %614 = vmatpush1.bf16.msra.mxu0 %v515
        %615 = vmatprep.subr.bf16.mxu0 0
        %616 = vmatpush1.bf16.msra.mxu0 %v512
        %617 = vmatprep.subr.bf16.mxu0 0
        %618 = vmatpush2.bf16.msra.mxu0 0
        %619 = vmatprep.subr.bf16.mxu0 0
        %620 = vmatpush2.bf16.msra.mxu0 0
        %621 = vmatprep.subr.bf16.mxu0 0
        %622 = vmatpush2.bf16.msra.mxu0 0
        %623 = vmatprep.subr.bf16.mxu0 0
        %624 = vmatpush2.bf16.msra.mxu0 0
        %625 = vmatprep.subr.bf16.mxu0 0
        %626 = vmatpush2.bf16.msra.mxu0 0
        %627 = vmatprep.subr.bf16.mxu0 0
        %628 = vmatpush2.bf16.msra.mxu0 0
        %629 = vmatprep.subr.bf16.mxu0 0
        %630 = vmatpush2.bf16.msra.mxu0 0
        %631 = vmatprep.subr.bf16.mxu0 0
        %632 = vmatpush2.bf16.msra.mxu0 0
        %633 = vmatprep.mubr.bf16.mxu0 0
        %634 = vmatmul.mubr.bf16.gmra.mxu0 %v396
        %v635 = vpop.f32.mrf.mxu0
        %v636 = vadd.f32 0.0, %v635
        %v637 = vpop.f32.mrf.mxu0
        %v638 = vpop.f32.mrf.mxu0
        %v639 = vadd.f32 0.0, %v638
        %v640 = vpop.f32.mrf.mxu0
        %641 = vdwg.mxu0
        %v674 = vunpack.c.l.b16 %v314
        %v675 = vunpack.c.h.b16 %v314
        %v676 = vunpack.c.l.b16 %v315
        %v677 = vunpack.c.l.b16 %v316
        %v678 = vunpack.c.h.b16 %v316
        %v679 = vunpack.c.l.b16 %v317
        %v680 = vunpack.c.l.b16 %v318
        %v681 = vunpack.c.h.b16 %v318
        %v682 = vunpack.c.l.b16 %v319
        %v683 = vunpack.c.l.b16 %v320
        %v684 = vunpack.c.h.b16 %v320
        %v685 = vunpack.c.l.b16 %v321
        %v686 = vunpack.c.l.b16 %v322
        %v687 = vunpack.c.h.b16 %v322
        %v688 = vunpack.c.l.b16 %v323
        %v689 = vunpack.c.l.b16 %v324
        %v690 = vunpack.c.h.b16 %v324
        %v691 = vunpack.c.l.b16 %v325
        %v692 = vunpack.c.l.b16 %v326
        %v693 = vunpack.c.h.b16 %v326
        %v694 = vunpack.c.l.b16 %v327
        %v695 = vunpack.c.l.b16 %v328
        %v696 = vunpack.c.h.b16 %v328
        %v697 = vunpack.c.l.b16 %v329
        %v698 = vunpack.c.l.b16 %v330
        %v699 = vunpack.c.h.b16 %v330
        %v700 = vunpack.c.l.b16 %v331
        %v701 = vunpack.c.l.b16 %v332
        %v702 = vunpack.c.h.b16 %v332
        %v703 = vunpack.c.l.b16 %v333
        %v704 = vunpack.c.l.b16 %v334
        %v705 = vunpack.c.h.b16 %v334
        %v706 = vunpack.c.l.b16 %v335
        %v707 = vunpack.c.l.b16 %v336
        %v708 = vunpack.c.h.b16 %v336
        %v709 = vunpack.c.l.b16 %v337
        %v710 = vunpack.c.l.b16 %v338
        %v711 = vunpack.c.h.b16 %v338
        %v712 = vunpack.c.l.b16 %v339
        %v713 = vunpack.c.l.b16 %v340
        %v714 = vunpack.c.h.b16 %v340
        %v715 = vunpack.c.l.b16 %v341
        %v716 = vunpack.c.l.b16 %v342
        %v717 = vunpack.c.h.b16 %v342
        %v718 = vunpack.c.l.b16 %v343
        %v719 = vunpack.c.l.b16 %v344
        %v720 = vunpack.c.h.b16 %v344
        %v721 = vunpack.c.l.b16 %v345
        %v722 = vpack.c.b16 %v677, %v674
        %v723 = vpack.c.b16 %v678, %v675
        %v724 = vpack.c.b16 %v679, %v676
        %v725 = vpack.c.b16 %v683, %v680
        %v726 = vpack.c.b16 %v684, %v681
        %v727 = vpack.c.b16 %v685, %v682
        %v728 = vpack.c.b16 %v689, %v686
        %v729 = vpack.c.b16 %v690, %v687
        %v730 = vpack.c.b16 %v691, %v688
        %v731 = vpack.c.b16 %v695, %v692
        %v732 = vpack.c.b16 %v696, %v693
        %v733 = vpack.c.b16 %v697, %v694
        %v734 = vpack.c.b16 %v701, %v698
        %v735 = vpack.c.b16 %v702, %v699
        %v736 = vpack.c.b16 %v703, %v700
        %v737 = vpack.c.b16 %v707, %v704
        %v738 = vpack.c.b16 %v708, %v705
        %v739 = vpack.c.b16 %v709, %v706
        %v740 = vpack.c.b16 %v713, %v710
        %v741 = vpack.c.b16 %v714, %v711
        %v742 = vpack.c.b16 %v715, %v712
        %v743 = vpack.c.b16 %v719, %v716
        %v744 = vpack.c.b16 %v720, %v717
        %v745 = vpack.c.b16 %v721, %v718
        %770 = vmatprep.subr.bf16.mxu0 %v744
        %771 = vmatpush1.bf16.msra.mxu0 %v743
        %772 = vmatprep.subr.bf16.mxu0 %v741
        %773 = vmatpush1.bf16.msra.mxu0 %v740
        %774 = vmatprep.subr.bf16.mxu0 %v738
        %775 = vmatpush1.bf16.msra.mxu0 %v737
        %776 = vmatprep.subr.bf16.mxu0 %v735
        %777 = vmatpush1.bf16.msra.mxu0 %v734
        %778 = vmatprep.subr.bf16.mxu0 %v732
        %779 = vmatpush1.bf16.msra.mxu0 %v731
        %780 = vmatprep.subr.bf16.mxu0 %v729
        %781 = vmatpush1.bf16.msra.mxu0 %v728
        %782 = vmatprep.subr.bf16.mxu0 %v726
        %783 = vmatpush1.bf16.msra.mxu0 %v725
        %784 = vmatprep.subr.bf16.mxu0 %v723
        %785 = vmatpush1.bf16.msra.mxu0 %v722
        %786 = vmatprep.subr.bf16.mxu0 0
        %787 = vmatpush2.bf16.msra.mxu0 0
        %788 = vmatprep.subr.bf16.mxu0 0
        %789 = vmatpush2.bf16.msra.mxu0 0
        %790 = vmatprep.subr.bf16.mxu0 0
        %791 = vmatpush2.bf16.msra.mxu0 0
        %792 = vmatprep.subr.bf16.mxu0 0
        %793 = vmatpush2.bf16.msra.mxu0 0
        %794 = vmatprep.subr.bf16.mxu0 0
        %795 = vmatpush2.bf16.msra.mxu0 0
        %796 = vmatprep.subr.bf16.mxu0 0
        %797 = vmatpush2.bf16.msra.mxu0 0
        %798 = vmatprep.subr.bf16.mxu0 0
        %799 = vmatpush2.bf16.msra.mxu0 0
        %800 = vmatprep.subr.bf16.mxu0 0
        %801 = vmatpush2.bf16.msra.mxu0 0
        %802 = vmatprep.mubr.bf16.mxu0 0
        %803 = vmatmul.mubr.bf16.gmra.mxu0 %v313
        %v804 = vpop.f32.mrf.mxu0
        %v805 = vadd.f32 %v593, %v804
        %v806 = vpop.f32.mrf.mxu0
        %v807 = vadd.f32 %v595, %v806
        %v808 = vpop.f32.mrf.mxu0
        %v809 = vadd.f32 %v597, %v808
        %v810 = vpop.f32.mrf.mxu0
        %v811 = vadd.f32 %v599, %v810
        %812 = vdwg.mxu0
        %813 = vmatprep.subr.bf16.mxu0 0
        %814 = vmatpush1.bf16.msra.mxu0 %v745
        %815 = vmatprep.subr.bf16.mxu0 0
        %816 = vmatpush1.bf16.msra.mxu0 %v742
        %817 = vmatprep.subr.bf16.mxu0 0
        %818 = vmatpush1.bf16.msra.mxu0 %v739
        %819 = vmatprep.subr.bf16.mxu0 0
        %820 = vmatpush1.bf16.msra.mxu0 %v736
        %821 = vmatprep.subr.bf16.mxu0 0
        %822 = vmatpush1.bf16.msra.mxu0 %v733
        %823 = vmatprep.subr.bf16.mxu0 0
        %824 = vmatpush1.bf16.msra.mxu0 %v730
        %825 = vmatprep.subr.bf16.mxu0 0
        %826 = vmatpush1.bf16.msra.mxu0 %v727
        %827 = vmatprep.subr.bf16.mxu0 0
        %828 = vmatpush1.bf16.msra.mxu0 %v724
        %829 = vmatprep.subr.bf16.mxu0 0
        %830 = vmatpush2.bf16.msra.mxu0 0
        %831 = vmatprep.subr.bf16.mxu0 0
        %832 = vmatpush2.bf16.msra.mxu0 0
        %833 = vmatprep.subr.bf16.mxu0 0
        %834 = vmatpush2.bf16.msra.mxu0 0
        %835 = vmatprep.subr.bf16.mxu0 0
        %836 = vmatpush2.bf16.msra.mxu0 0
        %837 = vmatprep.subr.bf16.mxu0 0
        %838 = vmatpush2.bf16.msra.mxu0 0
        %839 = vmatprep.subr.bf16.mxu0 0
        %840 = vmatpush2.bf16.msra.mxu0 0
        %841 = vmatprep.subr.bf16.mxu0 0
        %842 = vmatpush2.bf16.msra.mxu0 0
        %843 = vmatprep.subr.bf16.mxu0 0
        %844 = vmatpush2.bf16.msra.mxu0 0
        %845 = vmatprep.mubr.bf16.mxu0 0
        %846 = vmatmul.mubr.bf16.gmra.mxu0 %v313
        %v847 = vpop.f32.mrf.mxu0
        %v848 = vadd.f32 %v636, %v847
        %v849 = vpop.f32.mrf.mxu0
        %v850 = vpop.f32.mrf.mxu0
        %v851 = vadd.f32 %v639, %v850
        %v852 = vpop.f32.mrf.mxu0
        %853 = vdwg.mxu0
        %854 = vmatprep.subr.bf16.mxu0 0
        %855 = vmatpush1.bf16.msra.mxu0 0
        %856 = vmatprep.subr.bf16.mxu0 0
        %857 = vmatpush1.bf16.msra.mxu0 0
        %858 = vmatprep.subr.bf16.mxu0 0
        %859 = vmatpush1.bf16.msra.mxu0 0
        %860 = vmatprep.subr.bf16.mxu0 0
        %861 = vmatpush1.bf16.msra.mxu0 0
        %862 = vmatprep.subr.bf16.mxu0 0
        %863 = vmatpush1.bf16.msra.mxu0 0
        %864 = vmatprep.subr.bf16.mxu0 0
        %865 = vmatpush1.bf16.msra.mxu0 0
        %866 = vmatprep.subr.bf16.mxu0 0
        %867 = vmatpush1.bf16.msra.mxu0 0
        %868 = vmatprep.subr.bf16.mxu0 0
        %869 = vmatpush1.bf16.msra.mxu0 %v396
        %870 = vmatprep.subr.bf16.mxu0 0
        %871 = vmatpush2.bf16.msra.mxu0 0
        %872 = vmatprep.subr.bf16.mxu0 0
        %873 = vmatpush2.bf16.msra.mxu0 0
        %874 = vmatprep.subr.bf16.mxu0 0
        %875 = vmatpush2.bf16.msra.mxu0 0
        %876 = vmatprep.subr.bf16.mxu0 0
        %877 = vmatpush2.bf16.msra.mxu0 0
        %878 = vmatprep.subr.bf16.mxu0 0
        %879 = vmatpush2.bf16.msra.mxu0 0
        %880 = vmatprep.subr.bf16.mxu0 0
        %881 = vmatpush2.bf16.msra.mxu0 0
        %882 = vmatprep.subr.bf16.mxu0 0
        %883 = vmatpush2.bf16.msra.mxu0 0
        %884 = vmatprep.subr.bf16.mxu0 0
        %885 = vmatpush2.bf16.msra.mxu0 0
        %886 = vmatprep.mubr.bf16.mxu0 0
        %887 = vmatmul.mubr.bf16.gmra.mxu0 %v353
        %v888 = vpop.f32.mrf.mxu0
        %v889 = vadd.f32 0.0, %v888
        %v890 = vpop.f32.mrf.mxu0
        %v891 = vpop.f32.mrf.mxu0
        %v892 = vadd.f32 0.0, %v891
        %v893 = vpop.f32.mrf.mxu0
        %894 = vdwg.mxu0
        %v895 = vmul.f32 %v889, 2.0
        %v896 = vmul.f32 %v892, 2.0
        %v897 = vsub.f32 %v895, %v311
        %v898 = vsub.f32 %v896, %v312
        %v899 = vpack.c.bf16 %v898, %v897
        %s900 = scalar_lea.vmem [#allocation4], 384
        %v901 = vld [vmem:[%s900] sm:$0xff]
        %v902 = vld [vmem:[%s900 + $0x8] sm:$0xf]
        %v903 = vld [vmem:[%s900 + $0xc] sm:$0xff]
        %v904 = vld [vmem:[%s900 + $0x14] sm:$0xf]
        %v905 = vld [vmem:[%s900 + $0x18] sm:$0xff]
        %v906 = vld [vmem:[%s900 + $0x20] sm:$0xf]
        %v907 = vld [vmem:[%s900 + $0x24] sm:$0xff]
        %v908 = vld [vmem:[%s900 + $0x2c] sm:$0xf]
        %v909 = vld [vmem:[%s900 + $0x30] sm:$0xff]
        %v910 = vld [vmem:[%s900 + $0x38] sm:$0xf]
        %v911 = vld [vmem:[%s900 + $0x3c] sm:$0xff]
        %v912 = vld [vmem:[%s900 + $0x44] sm:$0xf]
        %v913 = vld [vmem:[%s900 + $0x48] sm:$0xff]
        %v914 = vld [vmem:[%s900 + $0x50] sm:$0xf]
        %v915 = vld [vmem:[%s900 + $0x54] sm:$0xff]
        %v916 = vld [vmem:[%s900 + $0x5c] sm:$0xf]
        %v917 = vld [vmem:[%s900 + $0x60] sm:$0xff]
        %v918 = vld [vmem:[%s900 + $0x68] sm:$0xf]
        %v919 = vld [vmem:[%s900 + $0x6c] sm:$0xff]
        %v920 = vld [vmem:[%s900 + $0x74] sm:$0xf]
        %v921 = vld [vmem:[%s900 + $0x78] sm:$0xff]
        %v922 = vld [vmem:[%s900 + $0x80] sm:$0xf]
        %v923 = vld [vmem:[%s900 + $0x84] sm:$0xff]
        %v924 = vld [vmem:[%s900 + $0x8c] sm:$0xf]
        %v925 = vld [vmem:[%s900 + $0x90] sm:$0xff]
        %v926 = vld [vmem:[%s900 + $0x98] sm:$0xf]
        %v927 = vld [vmem:[%s900 + $0x9c] sm:$0xff]
        %v928 = vld [vmem:[%s900 + $0xa4] sm:$0xf]
        %v929 = vld [vmem:[%s900 + $0xa8] sm:$0xff]
        %v930 = vld [vmem:[%s900 + $0xb0] sm:$0xf]
        %v931 = vld [vmem:[%s900 + $0xb4] sm:$0xff]
        %v932 = vld [vmem:[%s900 + $0xbc] sm:$0xf]
        %v965 = vunpack.c.l.b16 %v901
        %v966 = vunpack.c.h.b16 %v901
        %v967 = vunpack.c.l.b16 %v902
        %v968 = vunpack.c.l.b16 %v903
        %v969 = vunpack.c.h.b16 %v903
        %v970 = vunpack.c.l.b16 %v904
        %v971 = vunpack.c.l.b16 %v905
        %v972 = vunpack.c.h.b16 %v905
        %v973 = vunpack.c.l.b16 %v906
        %v974 = vunpack.c.l.b16 %v907
        %v975 = vunpack.c.h.b16 %v907
        %v976 = vunpack.c.l.b16 %v908
        %v977 = vunpack.c.l.b16 %v909
        %v978 = vunpack.c.h.b16 %v909
        %v979 = vunpack.c.l.b16 %v910
        %v980 = vunpack.c.l.b16 %v911
        %v981 = vunpack.c.h.b16 %v911
        %v982 = vunpack.c.l.b16 %v912
        %v983 = vunpack.c.l.b16 %v913
        %v984 = vunpack.c.h.b16 %v913
        %v985 = vunpack.c.l.b16 %v914
        %v986 = vunpack.c.l.b16 %v915
        %v987 = vunpack.c.h.b16 %v915
        %v988 = vunpack.c.l.b16 %v916
        %v989 = vunpack.c.l.b16 %v917
        %v990 = vunpack.c.h.b16 %v917
        %v991 = vunpack.c.l.b16 %v918
        %v992 = vunpack.c.l.b16 %v919
        %v993 = vunpack.c.h.b16 %v919
        %v994 = vunpack.c.l.b16 %v920
        %v995 = vunpack.c.l.b16 %v921
        %v996 = vunpack.c.h.b16 %v921
        %v997 = vunpack.c.l.b16 %v922
        %v998 = vunpack.c.l.b16 %v923
        %v999 = vunpack.c.h.b16 %v923
        %v1000 = vunpack.c.l.b16 %v924
        %v1001 = vunpack.c.l.b16 %v925
        %v1002 = vunpack.c.h.b16 %v925
        %v1003 = vunpack.c.l.b16 %v926
        %v1004 = vunpack.c.l.b16 %v927
        %v1005 = vunpack.c.h.b16 %v927
        %v1006 = vunpack.c.l.b16 %v928
        %v1007 = vunpack.c.l.b16 %v929
        %v1008 = vunpack.c.h.b16 %v929
        %v1009 = vunpack.c.l.b16 %v930
        %v1010 = vunpack.c.l.b16 %v931
        %v1011 = vunpack.c.h.b16 %v931
        %v1012 = vunpack.c.l.b16 %v932
        %v1013 = vpack.c.b16 %v968, %v965
        %v1014 = vpack.c.b16 %v969, %v966
        %v1015 = vpack.c.b16 %v970, %v967
        %v1016 = vpack.c.b16 %v974, %v971
        %v1017 = vpack.c.b16 %v975, %v972
        %v1018 = vpack.c.b16 %v976, %v973
        %v1019 = vpack.c.b16 %v980, %v977
        %v1020 = vpack.c.b16 %v981, %v978
        %v1021 = vpack.c.b16 %v982, %v979
        %v1022 = vpack.c.b16 %v986, %v983
        %v1023 = vpack.c.b16 %v987, %v984
        %v1024 = vpack.c.b16 %v988, %v985
        %v1025 = vpack.c.b16 %v992, %v989
        %v1026 = vpack.c.b16 %v993, %v990
        %v1027 = vpack.c.b16 %v994, %v991
        %v1028 = vpack.c.b16 %v998, %v995
        %v1029 = vpack.c.b16 %v999, %v996
        %v1030 = vpack.c.b16 %v1000, %v997
        %v1031 = vpack.c.b16 %v1004, %v1001
        %v1032 = vpack.c.b16 %v1005, %v1002
        %v1033 = vpack.c.b16 %v1006, %v1003
        %v1034 = vpack.c.b16 %v1010, %v1007
        %v1035 = vpack.c.b16 %v1011, %v1008
        %v1036 = vpack.c.b16 %v1012, %v1009
        %1061 = vmatprep.subr.bf16.mxu0 %v1035
        %1062 = vmatpush1.bf16.msra.mxu0 %v1034
        %1063 = vmatprep.subr.bf16.mxu0 %v1032
        %1064 = vmatpush1.bf16.msra.mxu0 %v1031
        %1065 = vmatprep.subr.bf16.mxu0 %v1029
        %1066 = vmatpush1.bf16.msra.mxu0 %v1028
        %1067 = vmatprep.subr.bf16.mxu0 %v1026
        %1068 = vmatpush1.bf16.msra.mxu0 %v1025
        %1069 = vmatprep.subr.bf16.mxu0 %v1023
        %1070 = vmatpush1.bf16.msra.mxu0 %v1022
        %1071 = vmatprep.subr.bf16.mxu0 %v1020
        %1072 = vmatpush1.bf16.msra.mxu0 %v1019
        %1073 = vmatprep.subr.bf16.mxu0 %v1017
        %1074 = vmatpush1.bf16.msra.mxu0 %v1016
        %1075 = vmatprep.subr.bf16.mxu0 %v1014
        %1076 = vmatpush1.bf16.msra.mxu0 %v1013
        %1077 = vmatprep.subr.bf16.mxu0 0
        %1078 = vmatpush2.bf16.msra.mxu0 0
        %1079 = vmatprep.subr.bf16.mxu0 0
        %1080 = vmatpush2.bf16.msra.mxu0 0
        %1081 = vmatprep.subr.bf16.mxu0 0
        %1082 = vmatpush2.bf16.msra.mxu0 0
        %1083 = vmatprep.subr.bf16.mxu0 0
        %1084 = vmatpush2.bf16.msra.mxu0 0
        %1085 = vmatprep.subr.bf16.mxu0 0
        %1086 = vmatpush2.bf16.msra.mxu0 0
        %1087 = vmatprep.subr.bf16.mxu0 0
        %1088 = vmatpush2.bf16.msra.mxu0 0
        %1089 = vmatprep.subr.bf16.mxu0 0
        %1090 = vmatpush2.bf16.msra.mxu0 0
        %1091 = vmatprep.subr.bf16.mxu0 0
        %1092 = vmatpush2.bf16.msra.mxu0 0
        %1093 = vmatprep.mubr.bf16.mxu0 0
        %1094 = vmatmul.mubr.bf16.gmra.mxu0 %v899
        %v1095 = vpop.f32.mrf.mxu0
        %v1096 = vadd.f32 0.0, %v1095
        %v1097 = vpop.f32.mrf.mxu0
        %v1098 = vadd.f32 0.0, %v1097
        %v1099 = vpop.f32.mrf.mxu0
        %v1100 = vadd.f32 0.0, %v1099
        %v1101 = vpop.f32.mrf.mxu0
        %v1102 = vadd.f32 0.0, %v1101
        %1103 = vdwg.mxu0
        %1104 = vmatprep.subr.bf16.mxu0 0
        %1105 = vmatpush1.bf16.msra.mxu0 %v1036
        %1106 = vmatprep.subr.bf16.mxu0 0
        %1107 = vmatpush1.bf16.msra.mxu0 %v1033
        %1108 = vmatprep.subr.bf16.mxu0 0
        %1109 = vmatpush1.bf16.msra.mxu0 %v1030
        %1110 = vmatprep.subr.bf16.mxu0 0
        %1111 = vmatpush1.bf16.msra.mxu0 %v1027
        %1112 = vmatprep.subr.bf16.mxu0 0
        %1113 = vmatpush1.bf16.msra.mxu0 %v1024
        %1114 = vmatprep.subr.bf16.mxu0 0
        %1115 = vmatpush1.bf16.msra.mxu0 %v1021
        %1116 = vmatprep.subr.bf16.mxu0 0
        %1117 = vmatpush1.bf16.msra.mxu0 %v1018
        %1118 = vmatprep.subr.bf16.mxu0 0
        %1119 = vmatpush1.bf16.msra.mxu0 %v1015
        %1120 = vmatprep.subr.bf16.mxu0 0
        %1121 = vmatpush2.bf16.msra.mxu0 0
        %1122 = vmatprep.subr.bf16.mxu0 0
        %1123 = vmatpush2.bf16.msra.mxu0 0
        %1124 = vmatprep.subr.bf16.mxu0 0
        %1125 = vmatpush2.bf16.msra.mxu0 0
        %1126 = vmatprep.subr.bf16.mxu0 0
        %1127 = vmatpush2.bf16.msra.mxu0 0
        %1128 = vmatprep.subr.bf16.mxu0 0
        %1129 = vmatpush2.bf16.msra.mxu0 0
        %1130 = vmatprep.subr.bf16.mxu0 0
        %1131 = vmatpush2.bf16.msra.mxu0 0
        %1132 = vmatprep.subr.bf16.mxu0 0
        %1133 = vmatpush2.bf16.msra.mxu0 0
        %1134 = vmatprep.subr.bf16.mxu0 0
        %1135 = vmatpush2.bf16.msra.mxu0 0
        %1136 = vmatprep.mubr.bf16.mxu0 0
        %1137 = vmatmul.mubr.bf16.gmra.mxu0 %v899
        %v1138 = vpop.f32.mrf.mxu0
        %v1139 = vadd.f32 0.0, %v1138
        %v1140 = vpop.f32.mrf.mxu0
        %v1141 = vpop.f32.mrf.mxu0
        %v1142 = vadd.f32 0.0, %v1141
        %v1143 = vpop.f32.mrf.mxu0
        %1144 = vdwg.mxu0
        %v1145 = vadd.f32 %v805, %v1096
        %v1146 = vadd.f32 %v807, %v1098
        %v1147 = vadd.f32 %v848, %v1139
        %v1148 = vadd.f32 %v809, %v1100
        %v1149 = vadd.f32 %v811, %v1102
        %v1150 = vadd.f32 %v851, %v1142
        %v1151 = vld [vmem:[%s4] sm:$0x7]
        %v1153 = vlaneseq
        %v1154 = vshrl.u32 %v1153, 7
        %v1155 = vsub.s32 0, %v1154
        %v1156 = vrot.slane %v1151, %v1155
        %v1157 = vlaneseq
        %v1158 = vshrl.u32 %v1157, 7
        %v1159 = vsub.s32 1, %v1158
        %v1160 = vrot.slane %v1151, %v1159
        %v1161 = vlaneseq
        %v1162 = vshrl.u32 %v1161, 7
        %v1163 = vsub.s32 2, %v1162
        %v1164 = vrot.slane %v1151, %v1163
        %v1168 = vadd.f32 %v1145, %v1156
        %v1169 = vadd.f32 %v1146, %v1160
        %v1170 = vadd.f32 %v1147, %v1164
        %v1171 = vadd.f32 %v1148, %v1156
        %v1172 = vadd.f32 %v1149, %v1160
        %v1173 = vadd.f32 %v1150, %v1164
        %v1174 = vxor.u32 %v1168, 2147483648
        %v1175 = vxor.u32 %v1171, 2147483648
        %v1176 = vmul.f32 %v1174, 1.442695
        %v1177 = vpow.pop %v1176
        %v1178 = vmul.f32 %v1175, 1.442695
        %v1179 = vpow.pop %v1178
        %v1180 = vadd.f32 %v1177, 1.0
        %v1181 = vadd.f32 %v1179, 1.0
        %v1182 = vrcp.pop %v1180
        %v1183 = vmul.f32 1.0, %v1182
        %v1184 = vrcp.pop %v1181
        %v1185 = vmul.f32 1.0, %v1184
        %v1186 = vxor.u32 %v1169, 2147483648
        %v1187 = vxor.u32 %v1172, 2147483648
        %v1188 = vmul.f32 %v1186, 1.442695
        %v1189 = vpow.pop %v1188
        %v1190 = vmul.f32 %v1187, 1.442695
        %v1191 = vpow.pop %v1190
        %v1192 = vadd.f32 %v1189, 1.0
        %v1193 = vadd.f32 %v1191, 1.0
        %v1194 = vrcp.pop %v1192
        %v1195 = vmul.f32 1.0, %v1194
        %v1196 = vrcp.pop %v1193
        %v1197 = vmul.f32 1.0, %v1196
        %v1198 = vmul.f32 %v293, %v1195
        %v1199 = vmul.f32 %v294, %v1197
        %v1200 = vpack.c.bf16 %v1199, %v1198
        %v1201 = vld [vmem:[#allocation7] sm:$0xf]
        %v1202 = vld [vmem:[#allocation7 + $0x4] sm:$0xf]
        %v1203 = vld [vmem:[#allocation7 + $0x8] sm:$0xf]
        %v1204 = vld [vmem:[#allocation7 + $0xc] sm:$0xf]
        %v1205 = vld [vmem:[#allocation7 + $0x10] sm:$0xf]
        %v1206 = vld [vmem:[#allocation7 + $0x14] sm:$0xf]
        %v1207 = vld [vmem:[#allocation7 + $0x18] sm:$0xf]
        %v1208 = vld [vmem:[#allocation7 + $0x1c] sm:$0xf]
        %v1209 = vld [vmem:[#allocation7 + $0x20] sm:$0xf]
        %v1210 = vld [vmem:[#allocation7 + $0x24] sm:$0xf]
        %v1211 = vld [vmem:[#allocation7 + $0x28] sm:$0xf]
        %v1212 = vld [vmem:[#allocation7 + $0x2c] sm:$0xf]
        %v1213 = vld [vmem:[#allocation7 + $0x30] sm:$0xf]
        %v1214 = vld [vmem:[#allocation7 + $0x34] sm:$0xf]
        %v1215 = vld [vmem:[#allocation7 + $0x38] sm:$0xf]
        %v1216 = vld [vmem:[#allocation7 + $0x3c] sm:$0xf]
        %1217 = vmatprep.subr.bf16.mxu0 0
        %1218 = vmatpush1.bf16.msra.mxu0 0
        %1219 = vmatprep.subr.bf16.mxu0 0
        %1220 = vmatpush1.bf16.msra.mxu0 0
        %1221 = vmatprep.subr.bf16.mxu0 0
        %1222 = vmatpush1.bf16.msra.mxu0 0
        %1223 = vmatprep.subr.bf16.mxu0 0
        %1224 = vmatpush1.bf16.msra.mxu0 0
        %1225 = vmatprep.subr.bf16.mxu0 0
        %1226 = vmatpush1.bf16.msra.mxu0 0
        %1227 = vmatprep.subr.bf16.mxu0 0
        %1228 = vmatpush1.bf16.msra.mxu0 0
        %1229 = vmatprep.subr.bf16.mxu0 0
        %1230 = vmatpush1.bf16.msra.mxu0 0
        %1231 = vmatprep.subr.bf16.mxu0 0
        %1232 = vmatpush1.bf16.msra.mxu0 %v1200
        %1233 = vmatprep.subr.bf16.mxu0 0
        %1234 = vmatpush2.bf16.msra.mxu0 0
        %1235 = vmatprep.subr.bf16.mxu0 0
        %1236 = vmatpush2.bf16.msra.mxu0 0
        %1237 = vmatprep.subr.bf16.mxu0 0
        %1238 = vmatpush2.bf16.msra.mxu0 0
        %1239 = vmatprep.subr.bf16.mxu0 0
        %1240 = vmatpush2.bf16.msra.mxu0 0
        %1241 = vmatprep.subr.bf16.mxu0 0
        %1242 = vmatpush2.bf16.msra.mxu0 0
        %1243 = vmatprep.subr.bf16.mxu0 0
        %1244 = vmatpush2.bf16.msra.mxu0 0
        %1245 = vmatprep.subr.bf16.mxu0 0
        %1246 = vmatpush2.bf16.msra.mxu0 0
        %1247 = vmatprep.subr.bf16.mxu0 0
        %1248 = vmatpush2.bf16.msra.mxu0 0
        %1249 = vmatprep.mubr.bf16.mxu0 0
        %1250 = vmatmul.mubr.bf16.gmra.mxu0 %v353
        %v1251 = vpop.f32.mrf.mxu0
        %v1252 = vadd.f32 0.0, %v1251
        %v1253 = vpop.f32.mrf.mxu0
        %v1254 = vpop.f32.mrf.mxu0
        %v1255 = vadd.f32 0.0, %v1254
        %v1256 = vpop.f32.mrf.mxu0
        %1257 = vdwg.mxu0
        %v1258 = vpack.c.bf16 %v1255, %v1252
        %s1259 = scalar_lea.vmem [#allocation7], 64
        %v1260 = vld [vmem:[%s1259] sm:$0xf]
        %v1261 = vld [vmem:[%s1259 + $0x4] sm:$0xf]
        %v1262 = vld [vmem:[%s1259 + $0x8] sm:$0xf]
        %v1263 = vld [vmem:[%s1259 + $0xc] sm:$0xf]
        %v1264 = vld [vmem:[%s1259 + $0x10] sm:$0xf]
        %v1265 = vld [vmem:[%s1259 + $0x14] sm:$0xf]
        %v1266 = vld [vmem:[%s1259 + $0x18] sm:$0xf]
        %v1267 = vld [vmem:[%s1259 + $0x1c] sm:$0xf]
        %v1268 = vld [vmem:[%s1259 + $0x20] sm:$0xf]
        %v1269 = vld [vmem:[%s1259 + $0x24] sm:$0xf]
        %v1270 = vld [vmem:[%s1259 + $0x28] sm:$0xf]
        %v1271 = vld [vmem:[%s1259 + $0x2c] sm:$0xf]
        %v1272 = vld [vmem:[%s1259 + $0x30] sm:$0xf]
        %v1273 = vld [vmem:[%s1259 + $0x34] sm:$0xf]
        %v1274 = vld [vmem:[%s1259 + $0x38] sm:$0xf]
        %v1275 = vld [vmem:[%s1259 + $0x3c] sm:$0xf]
        %v1292 = vunpack.c.l.b16 %v1260
        %v1293 = vunpack.c.l.b16 %v1261
        %v1294 = vunpack.c.l.b16 %v1262
        %v1295 = vunpack.c.l.b16 %v1263
        %v1296 = vunpack.c.l.b16 %v1264
        %v1297 = vunpack.c.l.b16 %v1265
        %v1298 = vunpack.c.l.b16 %v1266
        %v1299 = vunpack.c.l.b16 %v1267
        %v1300 = vunpack.c.l.b16 %v1268
        %v1301 = vunpack.c.l.b16 %v1269
        %v1302 = vunpack.c.l.b16 %v1270
        %v1303 = vunpack.c.l.b16 %v1271
        %v1304 = vunpack.c.l.b16 %v1272
        %v1305 = vunpack.c.l.b16 %v1273
        %v1306 = vunpack.c.l.b16 %v1274
        %v1307 = vunpack.c.l.b16 %v1275
        %v1308 = vpack.c.b16 %v1293, %v1292
        %v1309 = vpack.c.b16 %v1295, %v1294
        %v1310 = vpack.c.b16 %v1297, %v1296
        %v1311 = vpack.c.b16 %v1299, %v1298
        %v1312 = vpack.c.b16 %v1301, %v1300
        %v1313 = vpack.c.b16 %v1303, %v1302
        %v1314 = vpack.c.b16 %v1305, %v1304
        %v1315 = vpack.c.b16 %v1307, %v1306
        %1324 = vmatprep.subr.bf16.mxu0 0
        %1325 = vmatpush1.bf16.msra.mxu0 %v1315
        %1326 = vmatprep.subr.bf16.mxu0 0
        %1327 = vmatpush1.bf16.msra.mxu0 %v1314
        %1328 = vmatprep.subr.bf16.mxu0 0
        %1329 = vmatpush1.bf16.msra.mxu0 %v1313
        %1330 = vmatprep.subr.bf16.mxu0 0
        %1331 = vmatpush1.bf16.msra.mxu0 %v1312
        %1332 = vmatprep.subr.bf16.mxu0 0
        %1333 = vmatpush1.bf16.msra.mxu0 %v1311
        %1334 = vmatprep.subr.bf16.mxu0 0
        %1335 = vmatpush1.bf16.msra.mxu0 %v1310
        %1336 = vmatprep.subr.bf16.mxu0 0
        %1337 = vmatpush1.bf16.msra.mxu0 %v1309
        %1338 = vmatprep.subr.bf16.mxu0 0
        %1339 = vmatpush1.bf16.msra.mxu0 %v1308
        %1340 = vmatprep.subr.bf16.mxu0 0
        %1341 = vmatpush2.bf16.msra.mxu0 0
        %1342 = vmatprep.subr.bf16.mxu0 0
        %1343 = vmatpush2.bf16.msra.mxu0 0
        %1344 = vmatprep.subr.bf16.mxu0 0
        %1345 = vmatpush2.bf16.msra.mxu0 0
        %1346 = vmatprep.subr.bf16.mxu0 0
        %1347 = vmatpush2.bf16.msra.mxu0 0
        %1348 = vmatprep.subr.bf16.mxu0 0
        %1349 = vmatpush2.bf16.msra.mxu0 0
        %1350 = vmatprep.subr.bf16.mxu0 0
        %1351 = vmatpush2.bf16.msra.mxu0 0
        %1352 = vmatprep.subr.bf16.mxu0 0
        %1353 = vmatpush2.bf16.msra.mxu0 0
        %1354 = vmatprep.subr.bf16.mxu0 0
        %1355 = vmatpush2.bf16.msra.mxu0 0
        %1356 = vmatprep.mubr.bf16.mxu0 0
        %1357 = vmatmul.mubr.bf16.gmra.mxu0 %v1258
        %v1358 = vpop.f32.mrf.mxu0
        %v1359 = vadd.f32 0.0, %v1358
        %v1360 = vpop.f32.mrf.mxu0
        %v1361 = vpop.f32.mrf.mxu0
        %v1362 = vadd.f32 0.0, %v1361
        %v1363 = vpop.f32.mrf.mxu0
        %1364 = vdwg.mxu0
        %v1381 = vunpack.c.l.b16 %v1201
        %v1382 = vunpack.c.l.b16 %v1202
        %v1383 = vunpack.c.l.b16 %v1203
        %v1384 = vunpack.c.l.b16 %v1204
        %v1385 = vunpack.c.l.b16 %v1205
        %v1386 = vunpack.c.l.b16 %v1206
        %v1387 = vunpack.c.l.b16 %v1207
        %v1388 = vunpack.c.l.b16 %v1208
        %v1389 = vunpack.c.l.b16 %v1209
        %v1390 = vunpack.c.l.b16 %v1210
        %v1391 = vunpack.c.l.b16 %v1211
        %v1392 = vunpack.c.l.b16 %v1212
        %v1393 = vunpack.c.l.b16 %v1213
        %v1394 = vunpack.c.l.b16 %v1214
        %v1395 = vunpack.c.l.b16 %v1215
        %v1396 = vunpack.c.l.b16 %v1216
        %v1397 = vpack.c.b16 %v1382, %v1381
        %v1398 = vpack.c.b16 %v1384, %v1383
        %v1399 = vpack.c.b16 %v1386, %v1385
        %v1400 = vpack.c.b16 %v1388, %v1387
        %v1401 = vpack.c.b16 %v1390, %v1389
        %v1402 = vpack.c.b16 %v1392, %v1391
        %v1403 = vpack.c.b16 %v1394, %v1393
        %v1404 = vpack.c.b16 %v1396, %v1395
        %1413 = vmatprep.subr.bf16.mxu0 0
        %1414 = vmatpush1.bf16.msra.mxu0 %v1404
        %1415 = vmatprep.subr.bf16.mxu0 0
        %1416 = vmatpush1.bf16.msra.mxu0 %v1403
        %1417 = vmatprep.subr.bf16.mxu0 0
        %1418 = vmatpush1.bf16.msra.mxu0 %v1402
        %1419 = vmatprep.subr.bf16.mxu0 0
        %1420 = vmatpush1.bf16.msra.mxu0 %v1401
        %1421 = vmatprep.subr.bf16.mxu0 0
        %1422 = vmatpush1.bf16.msra.mxu0 %v1400
        %1423 = vmatprep.subr.bf16.mxu0 0
        %1424 = vmatpush1.bf16.msra.mxu0 %v1399
        %1425 = vmatprep.subr.bf16.mxu0 0
        %1426 = vmatpush1.bf16.msra.mxu0 %v1398
        %1427 = vmatprep.subr.bf16.mxu0 0
        %1428 = vmatpush1.bf16.msra.mxu0 %v1397
        %1429 = vmatprep.subr.bf16.mxu0 0
        %1430 = vmatpush2.bf16.msra.mxu0 0
        %1431 = vmatprep.subr.bf16.mxu0 0
        %1432 = vmatpush2.bf16.msra.mxu0 0
        %1433 = vmatprep.subr.bf16.mxu0 0
        %1434 = vmatpush2.bf16.msra.mxu0 0
        %1435 = vmatprep.subr.bf16.mxu0 0
        %1436 = vmatpush2.bf16.msra.mxu0 0
        %1437 = vmatprep.subr.bf16.mxu0 0
        %1438 = vmatpush2.bf16.msra.mxu0 0
        %1439 = vmatprep.subr.bf16.mxu0 0
        %1440 = vmatpush2.bf16.msra.mxu0 0
        %1441 = vmatprep.subr.bf16.mxu0 0
        %1442 = vmatpush2.bf16.msra.mxu0 0
        %1443 = vmatprep.subr.bf16.mxu0 0
        %1444 = vmatpush2.bf16.msra.mxu0 0
        %1445 = vmatprep.mubr.bf16.mxu0 0
        %1446 = vmatmul.mubr.bf16.gmra.mxu0 %v1200
        %v1447 = vpop.f32.mrf.mxu0
        %v1448 = vadd.f32 %v1359, %v1447
        %v1449 = vpop.f32.mrf.mxu0
        %v1450 = vpop.f32.mrf.mxu0
        %v1451 = vadd.f32 %v1362, %v1450
        %v1452 = vpop.f32.mrf.mxu0
        %1453 = vdwg.mxu0
        %1454 = vmatprep.subr.bf16.mxu0 0
        %1455 = vmatpush1.bf16.msra.mxu0 0
        %1456 = vmatprep.subr.bf16.mxu0 0
        %1457 = vmatpush1.bf16.msra.mxu0 0
        %1458 = vmatprep.subr.bf16.mxu0 0
        %1459 = vmatpush1.bf16.msra.mxu0 0
        %1460 = vmatprep.subr.bf16.mxu0 0
        %1461 = vmatpush1.bf16.msra.mxu0 0
        %1462 = vmatprep.subr.bf16.mxu0 0
        %1463 = vmatpush1.bf16.msra.mxu0 0
        %1464 = vmatprep.subr.bf16.mxu0 0
        %1465 = vmatpush1.bf16.msra.mxu0 0
        %1466 = vmatprep.subr.bf16.mxu0 0
        %1467 = vmatpush1.bf16.msra.mxu0 0
        %1468 = vmatprep.subr.bf16.mxu0 0
        %1469 = vmatpush1.bf16.msra.mxu0 %v1258
        %1470 = vmatprep.subr.bf16.mxu0 0
        %1471 = vmatpush2.bf16.msra.mxu0 0
        %1472 = vmatprep.subr.bf16.mxu0 0
        %1473 = vmatpush2.bf16.msra.mxu0 0
        %1474 = vmatprep.subr.bf16.mxu0 0
        %1475 = vmatpush2.bf16.msra.mxu0 0
        %1476 = vmatprep.subr.bf16.mxu0 0
        %1477 = vmatpush2.bf16.msra.mxu0 0
        %1478 = vmatprep.subr.bf16.mxu0 0
        %1479 = vmatpush2.bf16.msra.mxu0 0
        %1480 = vmatprep.subr.bf16.mxu0 0
        %1481 = vmatpush2.bf16.msra.mxu0 0
        %1482 = vmatprep.subr.bf16.mxu0 0
        %1483 = vmatpush2.bf16.msra.mxu0 0
        %1484 = vmatprep.subr.bf16.mxu0 0
        %1485 = vmatpush2.bf16.msra.mxu0 0
        %1486 = vmatprep.mubr.bf16.mxu0 0
        %1487 = vmatmul.mubr.bf16.gmra.mxu0 %v353
        %v1488 = vpop.f32.mrf.mxu0
        %v1489 = vadd.f32 0.0, %v1488
        %v1490 = vpop.f32.mrf.mxu0
        %v1491 = vpop.f32.mrf.mxu0
        %v1492 = vadd.f32 0.0, %v1491
        %v1493 = vpop.f32.mrf.mxu0
        %1494 = vdwg.mxu0
        %v1495 = vmul.f32 %v1489, 2.0
        %v1496 = vmul.f32 %v1492, 2.0
        %v1497 = vsub.f32 %v1495, %v1198
        %v1498 = vsub.f32 %v1496, %v1199
        %v1499 = vpack.c.bf16 %v1498, %v1497
        %s1500 = scalar_lea.vmem [#allocation7], 128
        %v1501 = vld [vmem:[%s1500] sm:$0xf]
        %v1502 = vld [vmem:[%s1500 + $0x4] sm:$0xf]
        %v1503 = vld [vmem:[%s1500 + $0x8] sm:$0xf]
        %v1504 = vld [vmem:[%s1500 + $0xc] sm:$0xf]
        %v1505 = vld [vmem:[%s1500 + $0x10] sm:$0xf]
        %v1506 = vld [vmem:[%s1500 + $0x14] sm:$0xf]
        %v1507 = vld [vmem:[%s1500 + $0x18] sm:$0xf]
        %v1508 = vld [vmem:[%s1500 + $0x1c] sm:$0xf]
        %v1509 = vld [vmem:[%s1500 + $0x20] sm:$0xf]
        %v1510 = vld [vmem:[%s1500 + $0x24] sm:$0xf]
        %v1511 = vld [vmem:[%s1500 + $0x28] sm:$0xf]
        %v1512 = vld [vmem:[%s1500 + $0x2c] sm:$0xf]
        %v1513 = vld [vmem:[%s1500 + $0x30] sm:$0xf]
        %v1514 = vld [vmem:[%s1500 + $0x34] sm:$0xf]
        %v1515 = vld [vmem:[%s1500 + $0x38] sm:$0xf]
        %v1516 = vld [vmem:[%s1500 + $0x3c] sm:$0xf]
        %v1533 = vunpack.c.l.b16 %v1501
        %v1534 = vunpack.c.l.b16 %v1502
        %v1535 = vunpack.c.l.b16 %v1503
        %v1536 = vunpack.c.l.b16 %v1504
        %v1537 = vunpack.c.l.b16 %v1505
        %v1538 = vunpack.c.l.b16 %v1506
        %v1539 = vunpack.c.l.b16 %v1507
        %v1540 = vunpack.c.l.b16 %v1508
        %v1541 = vunpack.c.l.b16 %v1509
        %v1542 = vunpack.c.l.b16 %v1510
        %v1543 = vunpack.c.l.b16 %v1511
        %v1544 = vunpack.c.l.b16 %v1512
        %v1545 = vunpack.c.l.b16 %v1513
        %v1546 = vunpack.c.l.b16 %v1514
        %v1547 = vunpack.c.l.b16 %v1515
        %v1548 = vunpack.c.l.b16 %v1516
        %v1549 = vpack.c.b16 %v1534, %v1533
        %v1550 = vpack.c.b16 %v1536, %v1535
        %v1551 = vpack.c.b16 %v1538, %v1537
        %v1552 = vpack.c.b16 %v1540, %v1539
        %v1553 = vpack.c.b16 %v1542, %v1541
        %v1554 = vpack.c.b16 %v1544, %v1543
        %v1555 = vpack.c.b16 %v1546, %v1545
        %v1556 = vpack.c.b16 %v1548, %v1547
        %1565 = vmatprep.subr.bf16.mxu0 0
        %1566 = vmatpush1.bf16.msra.mxu0 %v1556
        %1567 = vmatprep.subr.bf16.mxu0 0
        %1568 = vmatpush1.bf16.msra.mxu0 %v1555
        %1569 = vmatprep.subr.bf16.mxu0 0
        %1570 = vmatpush1.bf16.msra.mxu0 %v1554
        %1571 = vmatprep.subr.bf16.mxu0 0
        %1572 = vmatpush1.bf16.msra.mxu0 %v1553
        %1573 = vmatprep.subr.bf16.mxu0 0
        %1574 = vmatpush1.bf16.msra.mxu0 %v1552
        %1575 = vmatprep.subr.bf16.mxu0 0
        %1576 = vmatpush1.bf16.msra.mxu0 %v1551
        %1577 = vmatprep.subr.bf16.mxu0 0
        %1578 = vmatpush1.bf16.msra.mxu0 %v1550
        %1579 = vmatprep.subr.bf16.mxu0 0
        %1580 = vmatpush1.bf16.msra.mxu0 %v1549
        %1581 = vmatprep.subr.bf16.mxu0 0
        %1582 = vmatpush2.bf16.msra.mxu0 0
        %1583 = vmatprep.subr.bf16.mxu0 0
        %1584 = vmatpush2.bf16.msra.mxu0 0
        %1585 = vmatprep.subr.bf16.mxu0 0
        %1586 = vmatpush2.bf16.msra.mxu0 0
        %1587 = vmatprep.subr.bf16.mxu0 0
        %1588 = vmatpush2.bf16.msra.mxu0 0
        %1589 = vmatprep.subr.bf16.mxu0 0
        %1590 = vmatpush2.bf16.msra.mxu0 0
        %1591 = vmatprep.subr.bf16.mxu0 0
        %1592 = vmatpush2.bf16.msra.mxu0 0
        %1593 = vmatprep.subr.bf16.mxu0 0
        %1594 = vmatpush2.bf16.msra.mxu0 0
        %1595 = vmatprep.subr.bf16.mxu0 0
        %1596 = vmatpush2.bf16.msra.mxu0 0
        %1597 = vmatprep.mubr.bf16.mxu0 0
        %1598 = vmatmul.mubr.bf16.gmra.mxu0 %v1499
        %v1599 = vpop.f32.mrf.mxu0
        %v1600 = vadd.f32 0.0, %v1599
        %v1601 = vpop.f32.mrf.mxu0
        %v1602 = vpop.f32.mrf.mxu0
        %v1603 = vadd.f32 0.0, %v1602
        %v1604 = vpop.f32.mrf.mxu0
        %1605 = vdwg.mxu0
        %v1606 = vadd.f32 %v1448, %v1600
        %v1607 = vadd.f32 %v1451, %v1603
        %v1608 = vmul.f32 %v1183, %v293
        %v1609 = vmul.f32 %v1185, %v294
        %v1610 = vsub.f32 1.0, %v1183
        %v1611 = vsub.f32 1.0, %v1185
        %v1612 = vadd.f32 %v1170, %v1606
        %v1613 = vadd.f32 %v1173, %v1607
        %v1614 = vtanh.pop %v1612
        %v1615 = vtanh.pop %v1613
        %v1616 = vmul.f32 %v1610, %v1614
        %v1617 = vmul.f32 %v1611, %v1615
        %v1618 = vadd.f32 %v1608, %v1616
        %v1619 = vadd.f32 %v1609, %v1617
        %1620 = vst [vmem:[#allocation2] sm:$0xff] %v1618
        %1621 = vst [vmem:[#allocation2 + $0x8] sm:$0xff] %v1619
        %1622 = vst [vmem:[%s274] sm:$0xff] %v1618
        %1623 = vst [vmem:[%s274 + $0x8] sm:$0xff] %v1619
        %s1624 = sand.u32 %s161, 1
        %s1625 = scalar_lea.sflag [#allocation6], %s1624
        %s1626 = sand.u32 %s161, 1
        %s1627 = smul.addr %s1626, 16
        %s1628 = scalar_lea.vmem [#allocation9], %s1627
        // Predicated region
        $region57: #{tpu_custom_call.1} parent=43 // pred_check
          %p1629 = pneg %p171
        $region58: #{tpu_custom_call.1} parent=43 // pred_check_branch
          %1631 = sbr.rel (%p1629) target = $region60
        $region59: #{tpu_custom_call.1} parent=43 // pred_region
          %s1633 = ssub.s32 256, 256
          %1634 = vsyncadd %s1625, %s1633
          %s1635 = smul.addr %s22, 2
          %s1636 = smul.addr %s1635, 128
          %s1637 = scalar_lea.hbm %s6, %s1636
          %s1638 = sshll.u32 %s1628, 4
          %s1639 = int_to_ptr.vmem [resolvable:$true] %s1638
          %1644 = dma.vmem_to_hbm [thread:$0]  %s1639, 256, %s1637, %s1625, 128, 128, 8
        $region60: #{tpu_custom_call.1} parent=43 // pred_fallthru
          _
      $region44: #{tpu_custom_call.1} parent=5 // pred_fallthru
        _
      %p1645 = scmp.le.s32.totalorder 2, %s17
      // Predicated region
      $region61: #{tpu_custom_call.1} parent=5 // pred_check
        %p1646 = pneg %p1645
      $region62: #{tpu_custom_call.1} parent=5 // pred_check_branch
        %1648 = sbr.rel (%p1646) target = $region64
      $region63: #{tpu_custom_call.1} parent=5 // pred_region
        %s1649 = ssub.s32 %s17, 2
        // Predicated region
        $region65: #{tpu_custom_call.1} parent=63 // pred_check
          %p1650 = pneg %p177
        $region66: #{tpu_custom_call.1} parent=63 // pred_check_branch
          %1652 = sbr.rel (%p1650) target = $region68
        $region67: #{tpu_custom_call.1} parent=63 // pred_region
          %s1653 = sand.u32 %s162, 1
          %s1654 = scalar_lea.sflag [#allocation6], %s1653
          %s1655 = sand.u32 %s162, 1
          %s1656 = smul.addr %s1655, 16
          %s1657 = scalar_lea.vmem [#allocation9], %s1656
          %1658 = dma.done %s1654, 256
        $region68: #{tpu_custom_call.1} parent=63 // pred_fallthru
          _
      $region64: #{tpu_custom_call.1} parent=5 // pred_fallthru
        _
    $region6: #{tpu_custom_call.1} parent=1 // loop_footer
      %s21 = sadd.s32 1, %s17
    $region7: #{tpu_custom_call.1} parent=1 // loop_footer_branch
      %16 = sbr.rel target = $region3
    $region8: #{tpu_custom_call.1} parent=1 // loop_exit
      _
    %1659 = vsyncpa [#allocation5], 1
    %s1660 = scalar_lea.sflag [#allocation5], 1
    %1661 = vsyncpa %s1660, 1
    %1662 = vsyncpa [#allocation8], 1
    %1663 = vsyncpa [#allocation6], 1
    %s1664 = scalar_lea.sflag [#allocation6], 1
    %1665 = vsyncpa %s1664, 1

</llo_original>
